<compile_context>
chip_gen: v6e
topology: v6e:2x2x1
jax: 0.10.0
libtpu: 0.0.40
codegen_flags: <defaults>
</compile_context>

<pallas_src>
import functools
import jax
import jax.numpy as jnp
from jax import lax
from jax.experimental import pallas as pl
from jax.experimental.pallas import tpu as pltpu


def _round_up(x, m):
    return ((x + m - 1) // m) * m


# ----------------------------------------------------------------------------
# Fused Pallas kernel: SA shared-MLP + running max-pool over nsample + head
# ----------------------------------------------------------------------------
def _sa_head_kernel(x_ref,
                    w1, b1, w2, b2, w3, b3,            # SA MLP (BN scale folded into wN)
                    hw1, hb1, hw2, hb2, hw3, hbias3,   # head   (BN scale folded into hwN)
                    feat_ref, net_ref, acc_ref):
    # x_ref:   (T, S_chunk, Cin_pad) bf16
    # feat_ref:(T, 128) bf16    net_ref:(T, OC_pad) f32    acc_ref:(T, 128) f32
    s = pl.program_id(1)
    T, Sc, Cin = x_ref.shape
    x = x_ref[...].reshape(T * Sc, Cin)                 # all proposals in tile -> one MXU M-dim

    # shared MLP: Conv2d(1x1) == matmul; bf16 MXU, f32 accumulate, bias+ReLU epilogue
    h = jnp.dot(x, w1[...], preferred_element_type=jnp.float32)
    h = jnp.maximum(h + b1[...], 0.0).astype(jnp.bfloat16)
    h = jnp.dot(h, w2[...], preferred_element_type=jnp.float32)
    h = jnp.maximum(h + b2[...], 0.0).astype(jnp.bfloat16)
    # layer 3: raw accumulator only -- bias + ReLU are hoisted past the max-pool
    y3 = jnp.dot(h, w3[...], preferred_element_type=jnp.float32)        # (T*Sc, 128) f32

    chunk_max = jnp.max(y3.reshape(T, Sc, 128), axis=1)                 # (T, 128)

    @pl.when(s == 0)
    def _():
        acc_ref[...] = jnp.full_like(acc_ref, -jnp.inf)

    acc_ref[...] = jnp.maximum(acc_ref[...], chunk_max)                 # running max over nsample

    @pl.when(s == pl.num_programs(1) - 1)
    def _():
        pooled = jnp.maximum(acc_ref[...] + b3[...], 0.0)               # hoisted bias + ReLU
        feat_ref[...] = pooled.astype(feat_ref.dtype)                   # bf16 lane-dense store

        # proposal head: Conv1d(k=1) == matmul on pooled features (fused, once per tile)
        g = jnp.dot(pooled.astype(jnp.bfloat16), hw1[...], preferred_element_type=jnp.float32)
        g = jnp.maximum(g + hb1[...], 0.0).astype(jnp.bfloat16)
        g = jnp.dot(g, hw2[...], preferred_element_type=jnp.float32)
        g = jnp.maximum(g + hb2[...], 0.0).astype(jnp.bfloat16)
        net = jnp.dot(g, hw3[...], preferred_element_type=jnp.float32)
        net_ref[...] = net + hbias3[...]                                # (T, OC_pad) unmasked store


def _full_spec(a):
    return pl.BlockSpec(a.shape, lambda i, s, _nd=a.ndim: (0,) * _nd)


def _pick_tiles(P, S):
    """Tile sizes for the fused kernel.

    The nsample axis is chunked (<=128 samples per step) so per-step
    intermediates are bounded to ~(T*S_chunk, 128) regardless of nsample; the
    proposal tile T then targets ~8K matmul rows per step while keeping >=8
    parallel grid steps when there is enough work (>=4 per v7x TensorCore)."""
    if S <= 128:
        s_chunk = S                                    # single s-step; block == full axis
    else:
        s_chunk = 128                                  # multiple of 8 (sublane aligned)
    s_pad = _round_up(S, s_chunk)

    rows_target = 8192                                 # ~8-16 MiB live intermediates
    t = max(8, (rows_target // s_chunk) // 8 * 8)
    t = min(t, 512)
    t = min(t, max(8, _round_up(P, 64) // 8))          # >=8 parallel steps if enough work
    p_pad = _round_up(P, t)
    return t, s_chunk, p_pad, s_pad


def sa_and_head(grouped, sa_params, head_params):
    """grouped: (P, S, Cin_pad) bf16 -> (feat (P_pad,128) bf16, net (P_pad,OC_pad) f32)."""
    P, S, Cin = grouped.shape
    oc_pad = head_params[-1].shape[-1]
    T, S_chunk, P_pad, S_pad = _pick_tiles(P, S)
    if P_pad > P or S_pad > S:
        # edge-pad: duplicated samples never change the max; padded proposal
        # rows are sliced off in the wrapper.
        grouped = jnp.pad(grouped, ((0, P_pad - P), (0, S_pad - S), (0, 0)), mode="edge")
    params = tuple(sa_params) + tuple(head_params)
    feat, net = pl.pallas_call(
        _sa_head_kernel,
        out_shape=(jax.ShapeDtypeStruct((P_pad, 128), jnp.bfloat16),
                   jax.ShapeDtypeStruct((P_pad, oc_pad), jnp.float32)),
        grid=(P_pad // T, S_pad // S_chunk),
        in_specs=[pl.BlockSpec((T, S_chunk, Cin), lambda i, s: (i, s, 0))]
        + [_full_spec(p) for p in params],
        out_specs=(pl.BlockSpec((T, 128), lambda i, s: (i, 0)),
                   pl.BlockSpec((T, oc_pad), lambda i, s: (i, 0))),
        scratch_shapes=[pltpu.VMEM((T, 128), jnp.float32)],
        compiler_params=pltpu.CompilerParams(
            dimension_semantics=("parallel", "arbitrary"),
            vmem_limit_bytes=32 * 1024 * 1024),
    )(grouped, *params)
    return feat, net


# ----------------------------------------------------------------------------
# Plain-JAX glue: FPS, ball query, grouping, decode
# ----------------------------------------------------------------------------
def farthest_point_sample(xyz, npoint):
    # xyz: (B, N, 3) -> (B, npoint) int32
    # TODO(synk): serial FPS (npoint argmax passes) is latency-bound in plain
    # JAX; a small Pallas kernel keeping xyz + min-dist resident in VMEM would
    # remove the per-iteration HBM round trips.
    B, N, _ = xyz.shape

    def body(i, state):
        dists, inds, farthest = state
        inds = inds.at[:, i].set(farthest)
        centroid = xyz[jnp.arange(B), farthest]                          # (B, 3)
        d = jnp.sum((xyz - centroid[:, None, :]) ** 2, axis=-1)          # (B, N)
        dists = jnp.minimum(dists, d)
        farthest = jnp.argmax(dists, axis=-1).astype(jnp.int32)
        return dists, inds, farthest

    state = (jnp.full((B, N), 1e10, jnp.float32),
             jnp.zeros((B, npoint), jnp.int32),
             jnp.zeros((B,), jnp.int32))
    _, inds, _ = lax.fori_loop(0, npoint, body, state)
    return inds


def ball_query(xyz, new_xyz, radius, nsample):
    # xyz: (B, N, 3), new_xyz: (B, M, 3) -> (B, M, nsample) int32
    # top_k over a composite key (first nsample in-radius indices), instead of a
    # full argsort over N.
    N = xyz.shape[1]
    d2 = jnp.sum((new_xyz[:, :, None, :] - xyz[:, None, :, :]) ** 2, axis=-1)
    valid = d2 < radius * radius
    narange = jnp.arange(N, dtype=jnp.int32)
    key = jnp.where(valid, narange, narange + N)          # smaller key = preferred
    neg_vals, _ = lax.top_k(-key, nsample)                # nsample smallest keys
    keys_sel = -neg_vals                                  # ascending
    idx_raw = jnp.where(keys_sel < N, keys_sel, keys_sel - N).astype(jnp.int32)
    cnt = jnp.sum(valid, axis=-1, keepdims=True)
    j = jnp.arange(nsample, dtype=jnp.int32)[None, None, :]
    first = idx_raw[:, :, :1]
    return jnp.where(j < cnt, idx_raw, first)


def proposal_module_forward(xyz, features, params, cfg):
    """xyz: (B, K, 3) f32, features: (B, C, K) f32 (PyTorch NCW at the boundary)."""
    B, K, _ = xyz.shape
    M, S, radius = cfg["num_proposal"], cfg["nsample"], cfg["radius"]

    # ---- PointnetSAModuleVotes: FPS + ball query + grouping ----
    # TODO(synk): the grouped tensor still makes one HBM round trip (XLA gather
    # write + kernel read); an in-kernel gather (scalar-prefetched idx + manual
    # DMA from an ANY-space features ref) would remove it.
    fps_inds = farthest_point_sample(xyz, M)                             # (B, M)
    bidx = jnp.arange(B)[:, None]
    new_xyz = xyz[bidx, fps_inds]                                        # (B, M, 3)
    idx = ball_query(xyz, new_xyz, radius, S)                            # (B, M, S)
    bidx3 = jnp.arange(B)[:, None, None]
    grouped_xyz = xyz[bidx3, idx]                                        # (B, M, S, 3)
    grouped_xyz = (grouped_xyz - new_xyz[:, :, None, :]) / radius        # normalize_xyz=True
    feats_kl = jnp.transpose(features, (0, 2, 1))                        # (B, K, C) channels-last
    grouped_feat = feats_kl[bidx3, idx]                                  # (B, M, S, C)
    grouped = jnp.concatenate([grouped_xyz, grouped_feat], axis=-1)      # use_xyz=True
    P, Cin = B * M, grouped.shape[-1]
    # Cin is padded to a multiple of 8 only (never 128): keeps grouped HBM
    # footprint ~3x smaller while the 256-deep MXU absorbs K=Cin in one pass.
    Cin_pad = params["sa_mlp"][0].shape[0]
    grouped = grouped.reshape(P, S, Cin)
    if Cin_pad > Cin:
        grouped = jnp.pad(grouped, ((0, 0), (0, 0), (0, Cin_pad - Cin)))
    grouped = grouped.astype(jnp.bfloat16)                               # halve HBM traffic

    # ---- fused: shared MLP + max-pool + proposal head (Pallas) ----
    feat_pad, net_pad = sa_and_head(grouped, params["sa_mlp"], params["head"])
    agg_feat = feat_pad[:P].astype(jnp.float32).reshape(B, M, 128)       # (B, M, 128)
    # Head output channels match the reference module exactly:
    # Conv1d(128, 3 + NS*4 + num_class, 1); num_heading_bin is unused there too.
    OC = 3 + cfg["num_size_cluster"] * 4 + cfg["num_class"]
    net = net_pad[:P, :OC].reshape(B, M, OC)                             # drop lane padding

    # ---- decode_scores (cheap slicing/broadcast, plain JAX glue) ----
    NS = cfg["num_size_cluster"]
    center = new_xyz + net[:, :, 0:3]
    size_scores = net[:, :, 3:3 + NS]
    size_res_norm = net[:, :, 3 + NS:3 + NS * 4].reshape(B, M, NS, 3)
    size_res = size_res_norm * params["mean_size_arr"][None, None, :, :]
    sem_cls_scores = net[:, :, 3 + NS * 4:]

    return {
        "aggregated_vote_xyz": new_xyz,
        "aggregated_vote_features": agg_feat,         # == features.permute(0,2,1)
        "aggregated_vote_inds": fps_inds,
        "center": center,
        "size_scores": size_scores,
        "size_residuals_normalized": size_res_norm,
        "size_residuals": size_res,
        "sem_cls_scores": sem_cls_scores,
    }


# ----------------------------------------------------------------------------
# Deterministic parameter init (BatchNorm folded with eval-mode running stats;
# the BN scale is folded into the weight columns in f32 BEFORE the bf16 cast,
# leaving only bias + ReLU in the kernel epilogues).
# ----------------------------------------------------------------------------
def init_params(key, num_class, num_size_cluster, seed_feat_dim):
    # TODO(synk): BatchNorm folded with fixed (eval-mode) running statistics.
    cin = seed_feat_dim + 3                            # use_xyz=True
    cin_pad = _round_up(cin, 8)                        # MXU K-dim alignment (NOT 128)
    oc = 3 + num_size_cluster * 4 + num_class
    oc_pad = _round_up(max(oc, 128), 128)              # lane-dense head output

    def bn_fold(k, c, eps=1e-5):
        k1, k2, k3, k4 = jax.random.split(k, 4)
        gamma = 1.0 + 0.1 * jax.random.normal(k1, (1, c), jnp.float32)
        beta = 0.1 * jax.random.normal(k2, (1, c), jnp.float32)
        mean = 0.05 * jax.random.normal(k3, (1, c), jnp.float32)
        var = 1.0 + 0.1 * jax.random.uniform(k4, (1, c), dtype=jnp.float32)
        s = gamma / jnp.sqrt(var + eps)
        return s, beta - mean * s

    def w(k, i, o, scale=None, i_pad=None, o_pad=None):
        arr = 0.1 * jax.random.normal(k, (i, o), jnp.float32)
        if scale is not None:
            arr = arr * scale                          # fold BN scale into output columns (f32)
        arr = jnp.pad(arr, ((0, (i_pad or i) - i), (0, (o_pad or o) - o)))
        return arr.astype(jnp.bfloat16)                # bf16 weights for the MXU

    ks = jax.random.split(key, 16)
    s1, b1 = bn_fold(ks[1], 128)
    s2, b2 = bn_fold(ks[3], 128)
    s3, b3 = bn_fold(ks[5], 128)
    sa_mlp = (w(ks[0], cin, 128, scale=s1, i_pad=cin_pad), b1,
              w(ks[2], 128, 128, scale=s2), b2,
              w(ks[4], 128, 128, scale=s3), b3)

    hs1, hb1 = bn_fold(ks[7], 128)
    hs2, hb2 = bn_fold(ks[9], 128)
    bias3 = 0.1 * jax.random.normal(ks[11], (1, oc), jnp.float32)
    bias3 = jnp.pad(bias3, ((0, 0), (0, oc_pad - oc)))
    head = (w(ks[6], 128, 128, scale=hs1), hb1,
            w(ks[8], 128, 128, scale=hs2), hb2,
            w(ks[10], 128, oc, o_pad=oc_pad), bias3)

    mean_size_arr = jnp.abs(
        0.5 + 0.2 * jax.random.normal(ks[12], (num_size_cluster, 3), jnp.float32))
    return {"sa_mlp": sa_mlp, "head": head, "mean_size_arr": mean_size_arr}


# ----------------------------------------------------------------------------
if __name__ == "__main__":
    key = jax.random.PRNGKey(0)
    B, K, seed_feat_dim = 2, 16, 32
    num_class, num_heading_bin, num_size_cluster = 4, 2, 3
    num_proposal, nsample, radius = 8, 16, 5.0      # module hardcodes nsample=512; small here

    kx, kf, kp = jax.random.split(key, 3)
    xyz = jax.random.uniform(kx, (B, K, 3), dtype=jnp.float32)
    features = jax.random.normal(kf, (B, seed_feat_dim, K), dtype=jnp.float32)  # (B, C, K) NCW

    params = init_params(kp, num_class, num_size_cluster, seed_feat_dim)
    cfg = dict(num_proposal=num_proposal, nsample=nsample, radius=radius,
               num_size_cluster=num_size_cluster, num_class=num_class,
               num_heading_bin=num_heading_bin)

    fwd = jax.jit(functools.partial(proposal_module_forward, cfg=cfg))
    out = fwd(xyz, features, params)
    jax.block_until_ready(out)

    assert out["aggregated_vote_features"].shape == (B, num_proposal, 128)
    assert out["center"].shape == (B, num_proposal, 3)
    assert out["size_scores"].shape == (B, num_proposal, num_size_cluster)
    assert out["size_residuals"].shape == (B, num_proposal, num_size_cluster, 3)
    assert out["sem_cls_scores"].shape == (B, num_proposal, num_class)
    print("KERNEL_OK")
</pallas_src>

<mosaic_0001>
module attributes {stable_mosaic.version = 11 : i64} {
  func.func @_sa_head_kernel(%arg0: i32, %arg1: i32, %arg2: memref<8x16x40xbf16, #tpu.memory_space<vmem>>, %arg3: memref<40x128xbf16, #tpu.memory_space<vmem>>, %arg4: memref<1x128xf32, #tpu.memory_space<vmem>>, %arg5: memref<128x128xbf16, #tpu.memory_space<vmem>>, %arg6: memref<1x128xf32, #tpu.memory_space<vmem>>, %arg7: memref<128x128xbf16, #tpu.memory_space<vmem>>, %arg8: memref<1x128xf32, #tpu.memory_space<vmem>>, %arg9: memref<128x128xbf16, #tpu.memory_space<vmem>>, %arg10: memref<1x128xf32, #tpu.memory_space<vmem>>, %arg11: memref<128x128xbf16, #tpu.memory_space<vmem>>, %arg12: memref<1x128xf32, #tpu.memory_space<vmem>>, %arg13: memref<128x128xbf16, #tpu.memory_space<vmem>>, %arg14: memref<1x128xf32, #tpu.memory_space<vmem>>, %arg15: memref<8x128xbf16, #tpu.memory_space<vmem>>, %arg16: memref<8x128xf32, #tpu.memory_space<vmem>>, %arg17: memref<8x128xf32, #tpu.memory_space<vmem>>) attributes {dimension_semantics = [#tpu.dimension_semantics<parallel>, #tpu.dimension_semantics<arbitrary>], iteration_bounds = array<i64: 2, 1>, scalar_prefetch = 0 : i64, scratch_operands = 1 : i64, tpu.core_type = #tpu.core_type<tc>, window_params = [{transform_indices = @transform_0, window_bounds = array<i64: 8, 16, 40>}, {pipeline_mode = #tpu.pipeline_mode<synchronous>, transform_indices = @transform_1, window_bounds = array<i64: 40, 128>}, {pipeline_mode = #tpu.pipeline_mode<synchronous>, transform_indices = @transform_2, window_bounds = array<i64: 1, 128>}, {pipeline_mode = #tpu.pipeline_mode<synchronous>, transform_indices = @transform_3, window_bounds = array<i64: 128, 128>}, {pipeline_mode = #tpu.pipeline_mode<synchronous>, transform_indices = @transform_4, window_bounds = array<i64: 1, 128>}, {pipeline_mode = #tpu.pipeline_mode<synchronous>, transform_indices = @transform_5, window_bounds = array<i64: 128, 128>}, {pipeline_mode = #tpu.pipeline_mode<synchronous>, transform_indices = @transform_6, window_bounds = array<i64: 1, 128>}, {pipeline_mode = #tpu.pipeline_mode<synchronous>, transform_indices = @transform_7, window_bounds = array<i64: 128, 128>}, {pipeline_mode = #tpu.pipeline_mode<synchronous>, transform_indices = @transform_8, window_bounds = array<i64: 1, 128>}, {pipeline_mode = #tpu.pipeline_mode<synchronous>, transform_indices = @transform_9, window_bounds = array<i64: 128, 128>}, {pipeline_mode = #tpu.pipeline_mode<synchronous>, transform_indices = @transform_10, window_bounds = array<i64: 1, 128>}, {pipeline_mode = #tpu.pipeline_mode<synchronous>, transform_indices = @transform_11, window_bounds = array<i64: 128, 128>}, {pipeline_mode = #tpu.pipeline_mode<synchronous>, transform_indices = @transform_12, window_bounds = array<i64: 1, 128>}, {transform_indices = @transform_13, window_bounds = array<i64: 8, 128>}, {transform_indices = @transform_14, window_bounds = array<i64: 8, 128>}]} {
    %c0 = arith.constant 0 : index
    %c0_0 = arith.constant 0 : index
    %c0_1 = arith.constant 0 : index
    %0 = vector.load %arg2[%c0, %c0_0, %c0_1] : memref<8x16x40xbf16, #tpu.memory_space<vmem>>, vector<8x16x40xbf16>
    %1 = vector.shape_cast %0 : vector<8x16x40xbf16> to vector<128x40xbf16>
    %c0_2 = arith.constant 0 : index
    %c0_3 = arith.constant 0 : index
    %2 = vector.load %arg3[%c0_2, %c0_3] : memref<40x128xbf16, #tpu.memory_space<vmem>>, vector<40x128xbf16>
    %cst = arith.constant dense<0.000000e+00> : vector<128x128xf32>
    %3 = tpu.matmul %1, %2, %cst {dimension_numbers = #tpu.dot_dimension_numbers<[1], [0], [0], [1], [0, 0, 1, 1], [], []>} : vector<128x40xbf16>, vector<40x128xbf16>, vector<128x128xf32> -> vector<128x128xf32>
    %c0_4 = arith.constant 0 : index
    %c0_5 = arith.constant 0 : index
    %4 = vector.load %arg4[%c0_4, %c0_5] : memref<1x128xf32, #tpu.memory_space<vmem>>, vector<1x128xf32>
    %5 = vector.broadcast %4 : vector<1x128xf32> to vector<128x128xf32>
    %6 = arith.addf %3, %5 : vector<128x128xf32>
    %cst_6 = arith.constant 0.000000e+00 : f32
    %7 = vector.broadcast %cst_6 : f32 to vector<128x128xf32>
    %8 = arith.maximumf %6, %7 : vector<128x128xf32>
    %9 = arith.truncf %8 : vector<128x128xf32> to vector<128x128xbf16>
    %c0_7 = arith.constant 0 : index
    %c0_8 = arith.constant 0 : index
    %10 = vector.load %arg5[%c0_7, %c0_8] : memref<128x128xbf16, #tpu.memory_space<vmem>>, vector<128x128xbf16>
    %cst_9 = arith.constant dense<0.000000e+00> : vector<128x128xf32>
    %11 = tpu.matmul %9, %10, %cst_9 {dimension_numbers = #tpu.dot_dimension_numbers<[1], [0], [0], [1], [0, 0, 1, 1], [], []>} : vector<128x128xbf16>, vector<128x128xbf16>, vector<128x128xf32> -> vector<128x128xf32>
    %c0_10 = arith.constant 0 : index
    %c0_11 = arith.constant 0 : index
    %12 = vector.load %arg6[%c0_10, %c0_11] : memref<1x128xf32, #tpu.memory_space<vmem>>, vector<1x128xf32>
    %13 = vector.broadcast %12 : vector<1x128xf32> to vector<128x128xf32>
    %14 = arith.addf %11, %13 : vector<128x128xf32>
    %cst_12 = arith.constant 0.000000e+00 : f32
    %15 = vector.broadcast %cst_12 : f32 to vector<128x128xf32>
    %16 = arith.maximumf %14, %15 : vector<128x128xf32>
    %17 = arith.truncf %16 : vector<128x128xf32> to vector<128x128xbf16>
    %c0_13 = arith.constant 0 : index
    %c0_14 = arith.constant 0 : index
    %18 = vector.load %arg7[%c0_13, %c0_14] : memref<128x128xbf16, #tpu.memory_space<vmem>>, vector<128x128xbf16>
    %cst_15 = arith.constant dense<0.000000e+00> : vector<128x128xf32>
    %19 = tpu.matmul %17, %18, %cst_15 {dimension_numbers = #tpu.dot_dimension_numbers<[1], [0], [0], [1], [0, 0, 1, 1], [], []>} : vector<128x128xbf16>, vector<128x128xbf16>, vector<128x128xf32> -> vector<128x128xf32>
    %20 = vector.shape_cast %19 : vector<128x128xf32> to vector<8x16x128xf32>
    %cst_16 = arith.constant dense<0xFF800000> : vector<8x128xf32>
    %21 = vector.multi_reduction <maximumf>, %20, %cst_16 [1] : vector<8x16x128xf32> to vector<8x128xf32>
    %c0_i32 = arith.constant 0 : i32
    %22 = arith.cmpi eq, %arg1, %c0_i32 : i32
    %23 = arith.extui %22 : i1 to i32
    %c0_i32_17 = arith.constant 0 : i32
    %24 = arith.cmpi ne, %23, %c0_i32_17 : i32
    scf.if %24 {
      %cst_24 = arith.constant 0xFF800000 : f32
      %31 = vector.broadcast %cst_24 : f32 to vector<8x128xf32>
      %c0_25 = arith.constant 0 : index
      %c0_26 = arith.constant 0 : index
      %32 = vector.load %arg17[%c0_25, %c0_26] : memref<8x128xf32, #tpu.memory_space<vmem>>, vector<8x128xf32>
      tpu.vector_store %arg17[%c0_25, %c0_26], %31 {strides = array<i32>} : memref<8x128xf32, #tpu.memory_space<vmem>>, vector<8x128xf32>,
    } else {
    }
    %c0_18 = arith.constant 0 : index
    %c0_19 = arith.constant 0 : index
    %25 = vector.load %arg17[%c0_18, %c0_19] : memref<8x128xf32, #tpu.memory_space<vmem>>, vector<8x128xf32>
    %26 = arith.maximumf %25, %21 : vector<8x128xf32>
    %c0_20 = arith.constant 0 : index
    %c0_21 = arith.constant 0 : index
    %27 = vector.load %arg17[%c0_20, %c0_21] : memref<8x128xf32, #tpu.memory_space<vmem>>, vector<8x128xf32>
    tpu.vector_store %arg17[%c0_20, %c0_21], %26 {strides = array<i32>} : memref<8x128xf32, #tpu.memory_space<vmem>>, vector<8x128xf32>,
    %c0_i32_22 = arith.constant 0 : i32
    %28 = arith.cmpi eq, %arg1, %c0_i32_22 : i32
    %29 = arith.extui %28 : i1 to i32
    %c0_i32_23 = arith.constant 0 : i32
    %30 = arith.cmpi ne, %29, %c0_i32_23 : i32
    scf.if %30 {
      %c0_24 = arith.constant 0 : index
      %c0_25 = arith.constant 0 : index
      %31 = vector.load %arg17[%c0_24, %c0_25] : memref<8x128xf32, #tpu.memory_space<vmem>>, vector<8x128xf32>
      %c0_26 = arith.constant 0 : index
      %c0_27 = arith.constant 0 : index
      %32 = vector.load %arg8[%c0_26, %c0_27] : memref<1x128xf32, #tpu.memory_space<vmem>>, vector<1x128xf32>
      %33 = vector.broadcast %32 : vector<1x128xf32> to vector<8x128xf32>
      %34 = arith.addf %31, %33 : vector<8x128xf32>
      %cst_28 = arith.constant 0.000000e+00 : f32
      %35 = vector.broadcast %cst_28 : f32 to vector<8x128xf32>
      %36 = arith.maximumf %34, %35 : vector<8x128xf32>
      %37 = arith.truncf %36 : vector<8x128xf32> to vector<8x128xbf16>
      %c0_29 = arith.constant 0 : index
      %c0_30 = arith.constant 0 : index
      %38 = vector.load %arg15[%c0_29, %c0_30] : memref<8x128xbf16, #tpu.memory_space<vmem>>, vector<8x128xbf16>
      tpu.vector_store %arg15[%c0_29, %c0_30], %37 {strides = array<i32>} : memref<8x128xbf16, #tpu.memory_space<vmem>>, vector<8x128xbf16>,
      %39 = arith.truncf %36 : vector<8x128xf32> to vector<8x128xbf16>
      %c0_31 = arith.constant 0 : index
      %c0_32 = arith.constant 0 : index
      %40 = vector.load %arg9[%c0_31, %c0_32] : memref<128x128xbf16, #tpu.memory_space<vmem>>, vector<128x128xbf16>
      %cst_33 = arith.constant dense<0.000000e+00> : vector<8x128xf32>
      %41 = tpu.matmul %39, %40, %cst_33 {dimension_numbers = #tpu.dot_dimension_numbers<[1], [0], [0], [1], [0, 0, 1, 1], [], []>} : vector<8x128xbf16>, vector<128x128xbf16>, vector<8x128xf32> -> vector<8x128xf32>
      %c0_34 = arith.constant 0 : index
      %c0_35 = arith.constant 0 : index
      %42 = vector.load %arg10[%c0_34, %c0_35] : memref<1x128xf32, #tpu.memory_space<vmem>>, vector<1x128xf32>
      %43 = vector.broadcast %42 : vector<1x128xf32> to vector<8x128xf32>
      %44 = arith.addf %41, %43 : vector<8x128xf32>
      %cst_36 = arith.constant 0.000000e+00 : f32
      %45 = vector.broadcast %cst_36 : f32 to vector<8x128xf32>
      %46 = arith.maximumf %44, %45 : vector<8x128xf32>
      %47 = arith.truncf %46 : vector<8x128xf32> to vector<8x128xbf16>
      %c0_37 = arith.constant 0 : index
      %c0_38 = arith.constant 0 : index
      %48 = vector.load %arg11[%c0_37, %c0_38] : memref<128x128xbf16, #tpu.memory_space<vmem>>, vector<128x128xbf16>
      %cst_39 = arith.constant dense<0.000000e+00> : vector<8x128xf32>
      %49 = tpu.matmul %47, %48, %cst_39 {dimension_numbers = #tpu.dot_dimension_numbers<[1], [0], [0], [1], [0, 0, 1, 1], [], []>} : vector<8x128xbf16>, vector<128x128xbf16>, vector<8x128xf32> -> vector<8x128xf32>
      %c0_40 = arith.constant 0 : index
      %c0_41 = arith.constant 0 : index
      %50 = vector.load %arg12[%c0_40, %c0_41] : memref<1x128xf32, #tpu.memory_space<vmem>>, vector<1x128xf32>
      %51 = vector.broadcast %50 : vector<1x128xf32> to vector<8x128xf32>
      %52 = arith.addf %49, %51 : vector<8x128xf32>
      %cst_42 = arith.constant 0.000000e+00 : f32
      %53 = vector.broadcast %cst_42 : f32 to vector<8x128xf32>
      %54 = arith.maximumf %52, %53 : vector<8x128xf32>
      %55 = arith.truncf %54 : vector<8x128xf32> to vector<8x128xbf16>
      %c0_43 = arith.constant 0 : index
      %c0_44 = arith.constant 0 : index
      %56 = vector.load %arg13[%c0_43, %c0_44] : memref<128x128xbf16, #tpu.memory_space<vmem>>, vector<128x128xbf16>
      %cst_45 = arith.constant dense<0.000000e+00> : vector<8x128xf32>
      %57 = tpu.matmul %55, %56, %cst_45 {dimension_numbers = #tpu.dot_dimension_numbers<[1], [0], [0], [1], [0, 0, 1, 1], [], []>} : vector<8x128xbf16>, vector<128x128xbf16>, vector<8x128xf32> -> vector<8x128xf32>
      %c0_46 = arith.constant 0 : index
      %c0_47 = arith.constant 0 : index
      %58 = vector.load %arg14[%c0_46, %c0_47] : memref<1x128xf32, #tpu.memory_space<vmem>>, vector<1x128xf32>
      %59 = vector.broadcast %58 : vector<1x128xf32> to vector<8x128xf32>
      %60 = arith.addf %57, %59 : vector<8x128xf32>
      %c0_48 = arith.constant 0 : index
      %c0_49 = arith.constant 0 : index
      %61 = vector.load %arg16[%c0_48, %c0_49] : memref<8x128xf32, #tpu.memory_space<vmem>>, vector<8x128xf32>
      tpu.vector_store %arg16[%c0_48, %c0_49], %60 {strides = array<i32>} : memref<8x128xf32, #tpu.memory_space<vmem>>, vector<8x128xf32>,
    } else {
    }
    return
  }
  func.func @transform_0(%arg0: i32, %arg1: i32) -> (i32, i32, i32) {
    %c0_i32 = arith.constant 0 : i32
    %c0_i32_0 = arith.constant 0 : i32
    return %arg0, %arg1, %c0_i32 : i32, i32, i32
  }
  func.func @transform_1(%arg0: i32, %arg1: i32) -> (i32, i32) {
    %c0_i32 = arith.constant 0 : i32
    %c0_i32_0 = arith.constant 0 : i32
    %c0_i32_1 = arith.constant 0 : i32
    return %c0_i32, %c0_i32_0 : i32, i32
  }
  func.func @transform_2(%arg0: i32, %arg1: i32) -> (i32, i32) {
    %c0_i32 = arith.constant 0 : i32
    %c0_i32_0 = arith.constant 0 : i32
    %c0_i32_1 = arith.constant 0 : i32
    return %c0_i32, %c0_i32_0 : i32, i32
  }
  func.func @transform_3(%arg0: i32, %arg1: i32) -> (i32, i32) {
    %c0_i32 = arith.constant 0 : i32
    %c0_i32_0 = arith.constant 0 : i32
    %c0_i32_1 = arith.constant 0 : i32
    return %c0_i32, %c0_i32_0 : i32, i32
  }
  func.func @transform_4(%arg0: i32, %arg1: i32) -> (i32, i32) {
    %c0_i32 = arith.constant 0 : i32
    %c0_i32_0 = arith.constant 0 : i32
    %c0_i32_1 = arith.constant 0 : i32
    return %c0_i32, %c0_i32_0 : i32, i32
  }
  func.func @transform_5(%arg0: i32, %arg1: i32) -> (i32, i32) {
    %c0_i32 = arith.constant 0 : i32
    %c0_i32_0 = arith.constant 0 : i32
    %c0_i32_1 = arith.constant 0 : i32
    return %c0_i32, %c0_i32_0 : i32, i32
  }
  func.func @transform_6(%arg0: i32, %arg1: i32) -> (i32, i32) {
    %c0_i32 = arith.constant 0 : i32
    %c0_i32_0 = arith.constant 0 : i32
    %c0_i32_1 = arith.constant 0 : i32
    return %c0_i32, %c0_i32_0 : i32, i32
  }
  func.func @transform_7(%arg0: i32, %arg1: i32) -> (i32, i32) {
    %c0_i32 = arith.constant 0 : i32
    %c0_i32_0 = arith.constant 0 : i32
    %c0_i32_1 = arith.constant 0 : i32
    return %c0_i32, %c0_i32_0 : i32, i32
  }
  func.func @transform_8(%arg0: i32, %arg1: i32) -> (i32, i32) {
    %c0_i32 = arith.constant 0 : i32
    %c0_i32_0 = arith.constant 0 : i32
    %c0_i32_1 = arith.constant 0 : i32
    return %c0_i32, %c0_i32_0 : i32, i32
  }
  func.func @transform_9(%arg0: i32, %arg1: i32) -> (i32, i32) {
    %c0_i32 = arith.constant 0 : i32
    %c0_i32_0 = arith.constant 0 : i32
    %c0_i32_1 = arith.constant 0 : i32
    return %c0_i32, %c0_i32_0 : i32, i32
  }
  func.func @transform_10(%arg0: i32, %arg1: i32) -> (i32, i32) {
    %c0_i32 = arith.constant 0 : i32
    %c0_i32_0 = arith.constant 0 : i32
    %c0_i32_1 = arith.constant 0 : i32
    return %c0_i32, %c0_i32_0 : i32, i32
  }
  func.func @transform_11(%arg0: i32, %arg1: i32) -> (i32, i32) {
    %c0_i32 = arith.constant 0 : i32
    %c0_i32_0 = arith.constant 0 : i32
    %c0_i32_1 = arith.constant 0 : i32
    return %c0_i32, %c0_i32_0 : i32, i32
  }
  func.func @transform_12(%arg0: i32, %arg1: i32) -> (i32, i32) {
    %c0_i32 = arith.constant 0 : i32
    %c0_i32_0 = arith.constant 0 : i32
    %c0_i32_1 = arith.constant 0 : i32
    return %c0_i32, %c0_i32_0 : i32, i32
  }
  func.func @transform_13(%arg0: i32, %arg1: i32) -> (i32, i32) {
    %c0_i32 = arith.constant 0 : i32
    %c0_i32_0 = arith.constant 0 : i32
    return %arg0, %c0_i32 : i32, i32
  }
  func.func @transform_14(%arg0: i32, %arg1: i32) -> (i32, i32) {
    %c0_i32 = arith.constant 0 : i32
    %c0_i32_0 = arith.constant 0 : i32
    return %arg0, %c0_i32 : i32, i32
  }
}

</mosaic_0001>

<llo_original>
// kernel: custom-call.8
$region0: #{custom-call.8}
  %s0 = inlined_call_operand.vmem [shape: f32[2,16], index: 0, kind: output, shape index: {}]

// kernel: proposal_module_forward.1
$region0: #{proposal_module_forward.1}
  #allocation0 [shape = 'u32[]', space=smem, size = 0x4, offset = 0x4, fixed_abs, tag = 'smem constant byte address 0x4 - core index']
  #allocation1 [shape = 'u32[144,128]{1,0:T(1,128)}', space=vmem, size = 0x12000, scoped, tag = 'internal scratch']
  #allocation2 [shape = 'f32[8,128]{1,0:T(8,128)}', space=vmem, size = 0x1000, scoped, tag = 'scratch operand']
  %s0 = inlined_call_operand.vmem [shape: bf16[16,16,40], index: 0, kind: input, shape index: {}]
  %s1 = inlined_call_operand.vmem [shape: bf16[40,128], index: 1, kind: input, shape index: {}]
  %s2 = inlined_call_operand.vmem [shape: f32[1,128], index: 2, kind: input, shape index: {}]
  %s3 = inlined_call_operand.vmem [shape: bf16[128,128], index: 3, kind: input, shape index: {}]
  %s4 = inlined_call_operand.vmem [shape: f32[1,128], index: 4, kind: input, shape index: {}]
  %s5 = inlined_call_operand.vmem [shape: bf16[128,128], index: 5, kind: input, shape index: {}]
  %s6 = inlined_call_operand.vmem [shape: f32[1,128], index: 6, kind: input, shape index: {}]
  %s7 = inlined_call_operand.vmem [shape: bf16[128,128], index: 7, kind: input, shape index: {}]
  %s8 = inlined_call_operand.vmem [shape: f32[1,128], index: 8, kind: input, shape index: {}]
  %s9 = inlined_call_operand.vmem [shape: bf16[128,128], index: 9, kind: input, shape index: {}]
  %s10 = inlined_call_operand.vmem [shape: f32[1,128], index: 10, kind: input, shape index: {}]
  %s11 = inlined_call_operand.vmem [shape: bf16[128,128], index: 11, kind: input, shape index: {}]
  %s12 = inlined_call_operand.vmem [shape: f32[1,128], index: 12, kind: input, shape index: {}]
  %s13 = inlined_call_operand.vmem [shape: bf16[16,128], index: 13, kind: output, shape index: {0}]
  %s14 = inlined_call_operand.vmem [shape: f32[16,128], index: 14, kind: output, shape index: {1}]
  %15 = xla_tuple %s13, %s14
  %s16 = sld [smem:[#allocation0]]
  $region101: #{proposal_module_forward.1} parent=0
    _
  %s18 = ssub.s32 1, %s16
  %s19 = scalar_select 0, %s18, %s16
  loop: start=0, step=1, limit=4
  $region2: #{proposal_module_forward.1} parent=0 // loop_pre_header
    _
  $region3: #{proposal_module_forward.1} parent=0 // loop_header
    %s21 = sphi 0, %s25
    %p22 = scmp.ge.s32.totalorder %s21, 4
    %s28 = sphi 0, %s40
    %s29 = sphi 0, %s36
    %s30 = sphi 0, %s28
    %s31 = sphi 0, %s29
    %s32 = sphi 0, %s30
    %s33 = sphi 0, %s31
    %s45 = sphi 0, %s47
    %s48 = sphi 0, %s45
    %s49 = sphi 0, %s48
    %s65 = sphi 0, %s49
    %s69 = sphi 0, %s69
    %s71 = sphi 0, %s69
    %s72 = sphi 0, %s71
    %s86 = sphi 0, %s72
    %s90 = sphi 0, %s90
    %s92 = sphi 0, %s90
    %s93 = sphi 0, %s92
    %s107 = sphi 0, %s93
    %s111 = sphi 0, %s111
    %s113 = sphi 0, %s111
    %s114 = sphi 0, %s113
    %s128 = sphi 0, %s114
    %s132 = sphi 0, %s132
    %s134 = sphi 0, %s132
    %s135 = sphi 0, %s134
    %s149 = sphi 0, %s135
    %s153 = sphi 0, %s153
    %s155 = sphi 0, %s153
    %s156 = sphi 0, %s155
    %s170 = sphi 0, %s156
    %s174 = sphi 0, %s174
    %s176 = sphi 0, %s174
    %s177 = sphi 0, %s176
    %s191 = sphi 0, %s177
    %s195 = sphi 0, %s195
    %s197 = sphi 0, %s195
    %s198 = sphi 0, %s197
    %s212 = sphi 0, %s198
    %s216 = sphi 0, %s216
    %s218 = sphi 0, %s216
    %s219 = sphi 0, %s218
    %s233 = sphi 0, %s219
    %s237 = sphi 0, %s237
    %s239 = sphi 0, %s237
    %s240 = sphi 0, %s239
    %s254 = sphi 0, %s240
    %s258 = sphi 0, %s258
    %s260 = sphi 0, %s258
    %s261 = sphi 0, %s260
    %s275 = sphi 0, %s261
    %s279 = sphi 0, %s279
    %s281 = sphi 0, %s279
    %s282 = sphi 0, %s281
    %s296 = sphi 0, %s282
    %s300 = sphi 0, %s300
    %s302 = sphi 0, %s300
    %s303 = sphi 0, %s302
    %s317 = sphi 0, %s303
    %s323 = sphi 0, %s325
    %s326 = sphi 0, %s323
    %s327 = sphi 0, %s326
    %s343 = sphi 0, %s327
    %s349 = sphi 0, %s351
    %s352 = sphi 0, %s349
    %s353 = sphi 0, %s352
    %s369 = sphi 0, %s353
  $region4: #{proposal_module_forward.1} parent=0 // loop_header_branch
    %24 = sbr.rel (%p22) target = $region8
  $region5: #{proposal_module_forward.1} parent=0 // loop_body
    %s26 = ssub.s32 %s21, 1
    %s27 = ssub.s32 %s21, 2
    %s34 = sadd.s32 1, %s29
    %p35 = scmp.ge.s32.totalorder %s34, 1
    %s36 = scalar_select %p35, 0, %s34
    %s37 = sadd.s32 1, %s28
    %s38 = scalar_select %p35, %s37, %s28
    %p39 = scmp.ge.s32.totalorder %s38, 2
    %s40 = scalar_select %p39, 0, %s38
    %s41 = ssub.s32 %s28, %s40
    %s42 = ssub.s32 %s29, %s36
    %s43 = sor.u32 %s41, %s42
    %p44 = scmp.eq.s32.totalorder %s43, 0
    %s46 = sadd.s32 %s45, 1
    %s47 = scalar_select %p44, %s45, %s46
    %p50 = pneg %p44
    %p51 = scmp.eq.s32.totalorder %s21, 1
    %p52 = por %p50, %p51
    %p53 = scmp.ne.s32.totalorder %s45, %s48
    %p54 = scmp.eq.s32.totalorder %s21, 0
    %p55 = por %p53, %p54
    %p56 = scmp.ne.s32.totalorder %s45, %s48
    %p57 = scmp.eq.s32.totalorder %s26, 1
    %p58 = por %p56, %p57
    %p59 = scmp.ne.s32.totalorder %s48, %s49
    %p60 = scmp.eq.s32.totalorder %s26, 0
    %p61 = por %p59, %p60
    %p62 = scmp.ne.s32.totalorder %s48, %s49
    %p63 = scmp.eq.s32.totalorder %s27, 1
    %p64 = por %p62, %p63
    %p66 = scmp.ne.s32.totalorder %s49, %s65
    %p67 = scmp.eq.s32.totalorder %s27, 0
    %p68 = por %p66, %p67
    %s70 = sadd.s32 %s69, 1
    %p73 = scmp.eq.s32.totalorder %s21, 1
    %p74 = scmp.ne.s32.totalorder %s69, %s71
    %p75 = scmp.eq.s32.totalorder %s21, 0
    %p76 = por %p74, %p75
    %p77 = scmp.ne.s32.totalorder %s69, %s71
    %p78 = scmp.eq.s32.totalorder %s26, 1
    %p79 = por %p77, %p78
    %p80 = scmp.ne.s32.totalorder %s71, %s72
    %p81 = scmp.eq.s32.totalorder %s26, 0
    %p82 = por %p80, %p81
    %p83 = scmp.ne.s32.totalorder %s71, %s72
    %p84 = scmp.eq.s32.totalorder %s27, 1
    %p85 = por %p83, %p84
    %p87 = scmp.ne.s32.totalorder %s72, %s86
    %p88 = scmp.eq.s32.totalorder %s27, 0
    %p89 = por %p87, %p88
    %s91 = sadd.s32 %s90, 1
    %p94 = scmp.eq.s32.totalorder %s21, 1
    %p95 = scmp.ne.s32.totalorder %s90, %s92
    %p96 = scmp.eq.s32.totalorder %s21, 0
    %p97 = por %p95, %p96
    %p98 = scmp.ne.s32.totalorder %s90, %s92
    %p99 = scmp.eq.s32.totalorder %s26, 1
    %p100 = por %p98, %p99
    %p101 = scmp.ne.s32.totalorder %s92, %s93
    %p102 = scmp.eq.s32.totalorder %s26, 0
    %p103 = por %p101, %p102
    %p104 = scmp.ne.s32.totalorder %s92, %s93
    %p105 = scmp.eq.s32.totalorder %s27, 1
    %p106 = por %p104, %p105
    %p108 = scmp.ne.s32.totalorder %s93, %s107
    %p109 = scmp.eq.s32.totalorder %s27, 0
    %p110 = por %p108, %p109
    %s112 = sadd.s32 %s111, 1
    %p115 = scmp.eq.s32.totalorder %s21, 1
    %p116 = scmp.ne.s32.totalorder %s111, %s113
    %p117 = scmp.eq.s32.totalorder %s21, 0
    %p118 = por %p116, %p117
    %p119 = scmp.ne.s32.totalorder %s111, %s113
    %p120 = scmp.eq.s32.totalorder %s26, 1
    %p121 = por %p119, %p120
    %p122 = scmp.ne.s32.totalorder %s113, %s114
    %p123 = scmp.eq.s32.totalorder %s26, 0
    %p124 = por %p122, %p123
    %p125 = scmp.ne.s32.totalorder %s113, %s114
    %p126 = scmp.eq.s32.totalorder %s27, 1
    %p127 = por %p125, %p126
    %p129 = scmp.ne.s32.totalorder %s114, %s128
    %p130 = scmp.eq.s32.totalorder %s27, 0
    %p131 = por %p129, %p130
    %s133 = sadd.s32 %s132, 1
    %p136 = scmp.eq.s32.totalorder %s21, 1
    %p137 = scmp.ne.s32.totalorder %s132, %s134
    %p138 = scmp.eq.s32.totalorder %s21, 0
    %p139 = por %p137, %p138
    %p140 = scmp.ne.s32.totalorder %s132, %s134
    %p141 = scmp.eq.s32.totalorder %s26, 1
    %p142 = por %p140, %p141
    %p143 = scmp.ne.s32.totalorder %s134, %s135
    %p144 = scmp.eq.s32.totalorder %s26, 0
    %p145 = por %p143, %p144
    %p146 = scmp.ne.s32.totalorder %s134, %s135
    %p147 = scmp.eq.s32.totalorder %s27, 1
    %p148 = por %p146, %p147
    %p150 = scmp.ne.s32.totalorder %s135, %s149
    %p151 = scmp.eq.s32.totalorder %s27, 0
    %p152 = por %p150, %p151
    %s154 = sadd.s32 %s153, 1
    %p157 = scmp.eq.s32.totalorder %s21, 1
    %p158 = scmp.ne.s32.totalorder %s153, %s155
    %p159 = scmp.eq.s32.totalorder %s21, 0
    %p160 = por %p158, %p159
    %p161 = scmp.ne.s32.totalorder %s153, %s155
    %p162 = scmp.eq.s32.totalorder %s26, 1
    %p163 = por %p161, %p162
    %p164 = scmp.ne.s32.totalorder %s155, %s156
    %p165 = scmp.eq.s32.totalorder %s26, 0
    %p166 = por %p164, %p165
    %p167 = scmp.ne.s32.totalorder %s155, %s156
    %p168 = scmp.eq.s32.totalorder %s27, 1
    %p169 = por %p167, %p168
    %p171 = scmp.ne.s32.totalorder %s156, %s170
    %p172 = scmp.eq.s32.totalorder %s27, 0
    %p173 = por %p171, %p172
    %s175 = sadd.s32 %s174, 1
    %p178 = scmp.eq.s32.totalorder %s21, 1
    %p179 = scmp.ne.s32.totalorder %s174, %s176
    %p180 = scmp.eq.s32.totalorder %s21, 0
    %p181 = por %p179, %p180
    %p182 = scmp.ne.s32.totalorder %s174, %s176
    %p183 = scmp.eq.s32.totalorder %s26, 1
    %p184 = por %p182, %p183
    %p185 = scmp.ne.s32.totalorder %s176, %s177
    %p186 = scmp.eq.s32.totalorder %s26, 0
    %p187 = por %p185, %p186
    %p188 = scmp.ne.s32.totalorder %s176, %s177
    %p189 = scmp.eq.s32.totalorder %s27, 1
    %p190 = por %p188, %p189
    %p192 = scmp.ne.s32.totalorder %s177, %s191
    %p193 = scmp.eq.s32.totalorder %s27, 0
    %p194 = por %p192, %p193
    %s196 = sadd.s32 %s195, 1
    %p199 = scmp.eq.s32.totalorder %s21, 1
    %p200 = scmp.ne.s32.totalorder %s195, %s197
    %p201 = scmp.eq.s32.totalorder %s21, 0
    %p202 = por %p200, %p201
    %p203 = scmp.ne.s32.totalorder %s195, %s197
    %p204 = scmp.eq.s32.totalorder %s26, 1
    %p205 = por %p203, %p204
    %p206 = scmp.ne.s32.totalorder %s197, %s198
    %p207 = scmp.eq.s32.totalorder %s26, 0
    %p208 = por %p206, %p207
    %p209 = scmp.ne.s32.totalorder %s197, %s198
    %p210 = scmp.eq.s32.totalorder %s27, 1
    %p211 = por %p209, %p210
    %p213 = scmp.ne.s32.totalorder %s198, %s212
    %p214 = scmp.eq.s32.totalorder %s27, 0
    %p215 = por %p213, %p214
    %s217 = sadd.s32 %s216, 1
    %p220 = scmp.eq.s32.totalorder %s21, 1
    %p221 = scmp.ne.s32.totalorder %s216, %s218
    %p222 = scmp.eq.s32.totalorder %s21, 0
    %p223 = por %p221, %p222
    %p224 = scmp.ne.s32.totalorder %s216, %s218
    %p225 = scmp.eq.s32.totalorder %s26, 1
    %p226 = por %p224, %p225
    %p227 = scmp.ne.s32.totalorder %s218, %s219
    %p228 = scmp.eq.s32.totalorder %s26, 0
    %p229 = por %p227, %p228
    %p230 = scmp.ne.s32.totalorder %s218, %s219
    %p231 = scmp.eq.s32.totalorder %s27, 1
    %p232 = por %p230, %p231
    %p234 = scmp.ne.s32.totalorder %s219, %s233
    %p235 = scmp.eq.s32.totalorder %s27, 0
    %p236 = por %p234, %p235
    %s238 = sadd.s32 %s237, 1
    %p241 = scmp.eq.s32.totalorder %s21, 1
    %p242 = scmp.ne.s32.totalorder %s237, %s239
    %p243 = scmp.eq.s32.totalorder %s21, 0
    %p244 = por %p242, %p243
    %p245 = scmp.ne.s32.totalorder %s237, %s239
    %p246 = scmp.eq.s32.totalorder %s26, 1
    %p247 = por %p245, %p246
    %p248 = scmp.ne.s32.totalorder %s239, %s240
    %p249 = scmp.eq.s32.totalorder %s26, 0
    %p250 = por %p248, %p249
    %p251 = scmp.ne.s32.totalorder %s239, %s240
    %p252 = scmp.eq.s32.totalorder %s27, 1
    %p253 = por %p251, %p252
    %p255 = scmp.ne.s32.totalorder %s240, %s254
    %p256 = scmp.eq.s32.totalorder %s27, 0
    %p257 = por %p255, %p256
    %s259 = sadd.s32 %s258, 1
    %p262 = scmp.eq.s32.totalorder %s21, 1
    %p263 = scmp.ne.s32.totalorder %s258, %s260
    %p264 = scmp.eq.s32.totalorder %s21, 0
    %p265 = por %p263, %p264
    %p266 = scmp.ne.s32.totalorder %s258, %s260
    %p267 = scmp.eq.s32.totalorder %s26, 1
    %p268 = por %p266, %p267
    %p269 = scmp.ne.s32.totalorder %s260, %s261
    %p270 = scmp.eq.s32.totalorder %s26, 0
    %p271 = por %p269, %p270
    %p272 = scmp.ne.s32.totalorder %s260, %s261
    %p273 = scmp.eq.s32.totalorder %s27, 1
    %p274 = por %p272, %p273
    %p276 = scmp.ne.s32.totalorder %s261, %s275
    %p277 = scmp.eq.s32.totalorder %s27, 0
    %p278 = por %p276, %p277
    %s280 = sadd.s32 %s279, 1
    %p283 = scmp.eq.s32.totalorder %s21, 1
    %p284 = scmp.ne.s32.totalorder %s279, %s281
    %p285 = scmp.eq.s32.totalorder %s21, 0
    %p286 = por %p284, %p285
    %p287 = scmp.ne.s32.totalorder %s279, %s281
    %p288 = scmp.eq.s32.totalorder %s26, 1
    %p289 = por %p287, %p288
    %p290 = scmp.ne.s32.totalorder %s281, %s282
    %p291 = scmp.eq.s32.totalorder %s26, 0
    %p292 = por %p290, %p291
    %p293 = scmp.ne.s32.totalorder %s281, %s282
    %p294 = scmp.eq.s32.totalorder %s27, 1
    %p295 = por %p293, %p294
    %p297 = scmp.ne.s32.totalorder %s282, %s296
    %p298 = scmp.eq.s32.totalorder %s27, 0
    %p299 = por %p297, %p298
    %s301 = sadd.s32 %s300, 1
    %p304 = scmp.eq.s32.totalorder %s21, 1
    %p305 = scmp.ne.s32.totalorder %s300, %s302
    %p306 = scmp.eq.s32.totalorder %s21, 0
    %p307 = por %p305, %p306
    %p308 = scmp.ne.s32.totalorder %s300, %s302
    %p309 = scmp.eq.s32.totalorder %s26, 1
    %p310 = por %p308, %p309
    %p311 = scmp.ne.s32.totalorder %s302, %s303
    %p312 = scmp.eq.s32.totalorder %s26, 0
    %p313 = por %p311, %p312
    %p314 = scmp.ne.s32.totalorder %s302, %s303
    %p315 = scmp.eq.s32.totalorder %s27, 1
    %p316 = por %p314, %p315
    %p318 = scmp.ne.s32.totalorder %s303, %s317
    %p319 = scmp.eq.s32.totalorder %s27, 0
    %p320 = por %p318, %p319
    %s321 = ssub.s32 %s28, %s40
    %p322 = scmp.eq.s32.totalorder %s321, 0
    %s324 = sadd.s32 %s323, 1
    %s325 = scalar_select %p322, %s323, %s324
    %p328 = pneg %p322
    %p329 = scmp.eq.s32.totalorder %s21, 1
    %p330 = por %p328, %p329
    %p331 = scmp.ne.s32.totalorder %s323, %s326
    %p332 = scmp.eq.s32.totalorder %s21, 0
    %p333 = por %p331, %p332
    %p334 = scmp.ne.s32.totalorder %s323, %s326
    %p335 = scmp.eq.s32.totalorder %s26, 1
    %p336 = por %p334, %p335
    %p337 = scmp.ne.s32.totalorder %s326, %s327
    %p338 = scmp.eq.s32.totalorder %s26, 0
    %p339 = por %p337, %p338
    %p340 = scmp.ne.s32.totalorder %s326, %s327
    %p341 = scmp.eq.s32.totalorder %s27, 1
    %p342 = por %p340, %p341
    %p344 = scmp.ne.s32.totalorder %s327, %s343
    %p345 = scmp.eq.s32.totalorder %s27, 0
    %p346 = por %p344, %p345
    %s347 = ssub.s32 %s28, %s40
    %p348 = scmp.eq.s32.totalorder %s347, 0
    %s350 = sadd.s32 %s349, 1
    %s351 = scalar_select %p348, %s349, %s350
    %p354 = pneg %p348
    %p355 = scmp.eq.s32.totalorder %s21, 1
    %p356 = por %p354, %p355
    %p357 = scmp.ne.s32.totalorder %s349, %s352
    %p358 = scmp.eq.s32.totalorder %s21, 0
    %p359 = por %p357, %p358
    %p360 = scmp.ne.s32.totalorder %s349, %s352
    %p361 = scmp.eq.s32.totalorder %s26, 1
    %p362 = por %p360, %p361
    %p363 = scmp.ne.s32.totalorder %s352, %s353
    %p364 = scmp.eq.s32.totalorder %s26, 0
    %p365 = por %p363, %p364
    %p366 = scmp.ne.s32.totalorder %s352, %s353
    %p367 = scmp.eq.s32.totalorder %s27, 1
    %p368 = por %p366, %p367
    %p370 = scmp.ne.s32.totalorder %s353, %s369
    %p371 = scmp.eq.s32.totalorder %s27, 0
    %p372 = por %p370, %p371
    %p373 = scmp.le.s32.totalorder 1, %s21
    %p374 = scmp.lt.s32.totalorder %s21, 3
    %p375 = pnand %p373, %p374
    %p376 = pneg %p375
    // Predicated region
    $region9: #{proposal_module_forward.1} parent=5 // pred_check
      _
    $region10: #{proposal_module_forward.1} parent=5 // pred_check_branch
      %378 = sbr.rel (%p375) target = $region12
    $region11: #{proposal_module_forward.1} parent=5 // pred_region
      %s379 = ssub.s32 %s21, 1
      // Predicated region
      $region13: #{proposal_module_forward.1} parent=11 // pred_check
        %p380 = pneg %p82
      $region14: #{proposal_module_forward.1} parent=11 // pred_check_branch
        %382 = sbr.rel (%p380) target = $region16
      $region15: #{proposal_module_forward.1} parent=11 // pred_region
        _
      $region16: #{proposal_module_forward.1} parent=11 // pred_fallthru
        _
      // Predicated region
      $region17: #{proposal_module_forward.1} parent=11 // pred_check
        %p383 = pneg %p103
      $region18: #{proposal_module_forward.1} parent=11 // pred_check_branch
        %385 = sbr.rel (%p383) target = $region20
      $region19: #{proposal_module_forward.1} parent=11 // pred_region
        _
      $region20: #{proposal_module_forward.1} parent=11 // pred_fallthru
        _
      // Predicated region
      $region21: #{proposal_module_forward.1} parent=11 // pred_check
        %p386 = pneg %p124
      $region22: #{proposal_module_forward.1} parent=11 // pred_check_branch
        %388 = sbr.rel (%p386) target = $region24
      $region23: #{proposal_module_forward.1} parent=11 // pred_region
        _
      $region24: #{proposal_module_forward.1} parent=11 // pred_fallthru
        _
      // Predicated region
      $region25: #{proposal_module_forward.1} parent=11 // pred_check
        %p389 = pneg %p145
      $region26: #{proposal_module_forward.1} parent=11 // pred_check_branch
        %391 = sbr.rel (%p389) target = $region28
      $region27: #{proposal_module_forward.1} parent=11 // pred_region
        _
      $region28: #{proposal_module_forward.1} parent=11 // pred_fallthru
        _
      // Predicated region
      $region29: #{proposal_module_forward.1} parent=11 // pred_check
        %p392 = pneg %p166
      $region30: #{proposal_module_forward.1} parent=11 // pred_check_branch
        %394 = sbr.rel (%p392) target = $region32
      $region31: #{proposal_module_forward.1} parent=11 // pred_region
        _
      $region32: #{proposal_module_forward.1} parent=11 // pred_fallthru
        _
      // Predicated region
      $region33: #{proposal_module_forward.1} parent=11 // pred_check
        %p395 = pneg %p187
      $region34: #{proposal_module_forward.1} parent=11 // pred_check_branch
        %397 = sbr.rel (%p395) target = $region36
      $region35: #{proposal_module_forward.1} parent=11 // pred_region
        _
      $region36: #{proposal_module_forward.1} parent=11 // pred_fallthru
        _
      // Predicated region
      $region37: #{proposal_module_forward.1} parent=11 // pred_check
        %p398 = pneg %p208
      $region38: #{proposal_module_forward.1} parent=11 // pred_check_branch
        %400 = sbr.rel (%p398) target = $region40
      $region39: #{proposal_module_forward.1} parent=11 // pred_region
        _
      $region40: #{proposal_module_forward.1} parent=11 // pred_fallthru
        _
      // Predicated region
      $region41: #{proposal_module_forward.1} parent=11 // pred_check
        %p401 = pneg %p229
      $region42: #{proposal_module_forward.1} parent=11 // pred_check_branch
        %403 = sbr.rel (%p401) target = $region44
      $region43: #{proposal_module_forward.1} parent=11 // pred_region
        _
      $region44: #{proposal_module_forward.1} parent=11 // pred_fallthru
        _
      // Predicated region
      $region45: #{proposal_module_forward.1} parent=11 // pred_check
        %p404 = pneg %p250
      $region46: #{proposal_module_forward.1} parent=11 // pred_check_branch
        %406 = sbr.rel (%p404) target = $region48
      $region47: #{proposal_module_forward.1} parent=11 // pred_region
        _
      $region48: #{proposal_module_forward.1} parent=11 // pred_fallthru
        _
      // Predicated region
      $region49: #{proposal_module_forward.1} parent=11 // pred_check
        %p407 = pneg %p271
      $region50: #{proposal_module_forward.1} parent=11 // pred_check_branch
        %409 = sbr.rel (%p407) target = $region52
      $region51: #{proposal_module_forward.1} parent=11 // pred_region
        _
      $region52: #{proposal_module_forward.1} parent=11 // pred_fallthru
        _
      // Predicated region
      $region53: #{proposal_module_forward.1} parent=11 // pred_check
        %p410 = pneg %p292
      $region54: #{proposal_module_forward.1} parent=11 // pred_check_branch
        %412 = sbr.rel (%p410) target = $region56
      $region55: #{proposal_module_forward.1} parent=11 // pred_region
        _
      $region56: #{proposal_module_forward.1} parent=11 // pred_fallthru
        _
      // Predicated region
      $region57: #{proposal_module_forward.1} parent=11 // pred_check
        %p413 = pneg %p313
      $region58: #{proposal_module_forward.1} parent=11 // pred_check_branch
        %415 = sbr.rel (%p413) target = $region60
      $region59: #{proposal_module_forward.1} parent=11 // pred_region
        _
      $region60: #{proposal_module_forward.1} parent=11 // pred_fallthru
        _
    $region12: #{proposal_module_forward.1} parent=5 // pred_fallthru
      _
    %p416 = scmp.lt.s32.totalorder %s21, 2
    // Predicated region
    $region61: #{proposal_module_forward.1} parent=5 // pred_check
      %p417 = pneg %p416
    $region62: #{proposal_module_forward.1} parent=5 // pred_check_branch
      %419 = sbr.rel (%p417) target = $region64
    $region63: #{proposal_module_forward.1} parent=5 // pred_region
      // Predicated region
      $region65: #{proposal_module_forward.1} parent=63 // pred_check
        %p420 = pneg %p55
      $region66: #{proposal_module_forward.1} parent=63 // pred_check_branch
        %422 = sbr.rel (%p420) target = $region68
      $region67: #{proposal_module_forward.1} parent=63 // pred_region
        %s423 = smul.u32 8, %s28
        %s424 = smul.u32 2, %s29
        %p425 = scmp.lt.s32.totalorder %s423, 15
        %s426 = scalar_select %p425, %s423, 15
        %p427 = scmp.lt.s32.totalorder %s424, 1
        %s428 = scalar_select %p427, %s424, 1
        %s429 = smul.addr %s426, 2
        %s430 = sadd.s32 %s428, %s429
        %s431 = smul.addr %s430, 4
        %s432 = scalar_lea.vmem %s0, %s431
        %s433 = smul.u32 8, %s28
        %s434 = smul.u32 2, %s29
      $region68: #{proposal_module_forward.1} parent=63 // pred_fallthru
        _
    $region64: #{proposal_module_forward.1} parent=5 // pred_fallthru
      _
    %p435 = scmp.le.s32.totalorder 1, %s21
    %p436 = scmp.lt.s32.totalorder %s21, 3
    %p437 = pnand %p435, %p436
    %p438 = pneg %p437
    // Predicated region
    $region69: #{proposal_module_forward.1} parent=5 // pred_check
      _
    $region70: #{proposal_module_forward.1} parent=5 // pred_check_branch
      %440 = sbr.rel (%p437) target = $region72
    $region71: #{proposal_module_forward.1} parent=5 // pred_region
      %s441 = ssub.s32 %s21, 1
      %s442 = smul.u32 8, %s30
      %s443 = smul.u32 2, %s31
      %p444 = scmp.lt.s32.totalorder %s442, 15
      %s445 = scalar_select %p444, %s442, 15
      %p446 = scmp.lt.s32.totalorder %s443, 1
      %s447 = scalar_select %p446, %s443, 1
      %s448 = smul.addr %s445, 2
      %s449 = sadd.s32 %s447, %s448
      %s450 = smul.addr %s449, 4
      %s451 = scalar_lea.vmem %s0, %s450
      %p452 = pneg %p61
      %p453 = pneg %p58
      %p454 = pneg %p82
      %p455 = pneg %p79
      %p456 = pneg %p103
      %p457 = pneg %p100
      %p458 = pneg %p124
      %p459 = pneg %p121
      %p460 = pneg %p145
      %p461 = pneg %p142
      %p462 = pneg %p166
      %p463 = pneg %p163
      %p464 = pneg %p187
      %p465 = pneg %p184
      %p466 = pneg %p208
      %p467 = pneg %p205
      %p468 = pneg %p229
      %p469 = pneg %p226
      %p470 = pneg %p250
      %p471 = pneg %p247
      %p472 = pneg %p271
      %p473 = pneg %p268
      %p474 = pneg %p292
      %p475 = pneg %p289
      %p476 = pneg %p313
      %p477 = pneg %p310
      %p478 = pneg %p339
      %p479 = pneg %p336
      %p480 = scmp.lt.s32.totalorder %s30, 1
      %s481 = scalar_select %p480, %s30, 1
      %s482 = smul.addr %s481, 4
      %s483 = scalar_lea.vmem %s13, %s482
      %p484 = pneg %p365
      %p485 = pneg %p362
      %p486 = scmp.lt.s32.totalorder %s30, 1
      %s487 = scalar_select %p486, %s30, 1
      %s488 = smul.addr %s487, 8
      %s489 = scalar_lea.vmem %s14, %s488
      %s490 = smul.u32 8, %s30
      %s491 = smul.u32 2, %s31
      %p492 = scmp.lt.s32.totalorder %s490, 15
      %s493 = scalar_select %p492, %s490, 15
      %p494 = scmp.lt.s32.totalorder %s491, 1
      %s495 = scalar_select %p494, %s491, 1
      %s496 = smul.addr %s493, 2
      %s497 = sadd.s32 %s495, %s496
      %s498 = smul.addr %s497, 4
      %s499 = scalar_lea.vmem %s0, %s498
      %s500 = smul.u32 8, %s30
      %s501 = smul.u32 2, %s31
      %p502 = scmp.lt.s32.totalorder %s30, 1
      %s503 = scalar_select %p502, %s30, 1
      %s504 = smul.addr %s503, 4
      %s505 = scalar_lea.vmem %s13, %s504
      %p506 = scmp.lt.s32.totalorder %s30, 1
      %s507 = scalar_select %p506, %s30, 1
      %s508 = smul.addr %s507, 8
      %s509 = scalar_lea.vmem %s14, %s508
      %v511 = vld [vmem:[%s499] sm:$0xf]
      %v512 = vld [vmem:[%s499 + $0x4] sm:$0xf]
      %v513 = vld [vmem:[%s499 + $0x8] sm:$0xf]
      %v514 = vld [vmem:[%s499 + $0xc] sm:$0xf]
      %v515 = vld [vmem:[%s499 + $0x10] sm:$0xf]
      %v516 = vld [vmem:[%s499 + $0x14] sm:$0xf]
      %v517 = vld [vmem:[%s499 + $0x18] sm:$0xf]
      %v518 = vld [vmem:[%s499 + $0x1c] sm:$0xf]
      %v519 = vld [vmem:[%s499 + $0x20] sm:$0xf]
      %v520 = vld [vmem:[%s499 + $0x24] sm:$0xf]
      %v521 = vld [vmem:[%s499 + $0x28] sm:$0xf]
      %v522 = vld [vmem:[%s499 + $0x2c] sm:$0xf]
      %v523 = vld [vmem:[%s499 + $0x30] sm:$0xf]
      %v524 = vld [vmem:[%s499 + $0x34] sm:$0xf]
      %v525 = vld [vmem:[%s499 + $0x38] sm:$0xf]
      %v526 = vld [vmem:[%s499 + $0x3c] sm:$0xf]
      %v527 = vld [vmem:[%s1] sm:$0xf]
      %v528 = vld [vmem:[%s1 + $0x4] sm:$0xf]
      %v529 = vld [vmem:[%s1 + $0x8] sm:$0xf]
      %v530 = vld [vmem:[%s1 + $0xc] sm:$0xf]
      %v531 = vld [vmem:[%s1 + $0x10] sm:$0xf]
      %v532 = vld [vmem:[%s2] sm:$0x1]
      %v534 = vlaneseq
      %v535 = vshrl.u32 %v534, 7
      %v536 = vsub.s32 0, %v535
      %v537 = vrot.slane %v532, %v536
      %v555 = vunpack.c.l.b16 %v511
      %v556 = vunpack.c.l.b16 %v512
      %v557 = vunpack.c.l.b16 %v513
      %v558 = vunpack.c.l.b16 %v514
      %v559 = vunpack.c.l.b16 %v515
      %v560 = vunpack.c.l.b16 %v516
      %v561 = vunpack.c.l.b16 %v517
      %v562 = vunpack.c.l.b16 %v518
      %v563 = vunpack.c.l.b16 %v519
      %v564 = vunpack.c.l.b16 %v520
      %v565 = vunpack.c.l.b16 %v521
      %v566 = vunpack.c.l.b16 %v522
      %v567 = vunpack.c.l.b16 %v523
      %v568 = vunpack.c.l.b16 %v524
      %v569 = vunpack.c.l.b16 %v525
      %v570 = vunpack.c.l.b16 %v526
      %v571 = vpack.c.b16 %v556, %v555
      %v572 = vpack.c.b16 %v558, %v557
      %v573 = vpack.c.b16 %v560, %v559
      %v574 = vpack.c.b16 %v562, %v561
      %v575 = vpack.c.b16 %v564, %v563
      %v576 = vpack.c.b16 %v566, %v565
      %v577 = vpack.c.b16 %v568, %v567
      %v578 = vpack.c.b16 %v570, %v569
      %v584 = vunpack.c.l.b16 %v527
      %v585 = vunpack.c.l.b16 %v528
      %v586 = vunpack.c.l.b16 %v529
      %v587 = vunpack.c.l.b16 %v530
      %v588 = vunpack.c.l.b16 %v531
      %v589 = vpack.c.b16 %v585, %v584
      %v590 = vpack.c.b16 %v587, %v586
      %v591 = vpack.c.b16 %v588, %v588
      %vm594 = vcmask 326656
      %v596 = vsel %vm594, %v571, 0
      %v599 = vsel %vm594, %v572, 0
      %v602 = vsel %vm594, %v573, 0
      %v605 = vsel %vm594, %v574, 0
      %v608 = vsel %vm594, %v575, 0
      %v611 = vsel %vm594, %v576, 0
      %v614 = vsel %vm594, %v577, 0
      %v617 = vsel %vm594, %v578, 0
      %vm619 = vcmask 1043456
      %v621 = vsel %vm619, %v591, 0
      %623 = vmatprep.subr.bf16.mxu0 0
      %624 = vmatpush1.bf16.msra.mxu0 0
      %625 = vmatprep.subr.bf16.mxu0 0
      %626 = vmatpush1.bf16.msra.mxu0 0
      %627 = vmatprep.subr.bf16.mxu0 0
      %628 = vmatpush1.bf16.msra.mxu0 0
      %629 = vmatprep.subr.bf16.mxu0 0
      %630 = vmatpush1.bf16.msra.mxu0 0
      %631 = vmatprep.subr.bf16.mxu0 0
      %632 = vmatpush1.bf16.msra.mxu0 0
      %633 = vmatprep.subr.bf16.mxu0 0
      %634 = vmatpush1.bf16.msra.mxu0 %v621
      %635 = vmatprep.subr.bf16.mxu0 0
      %636 = vmatpush1.bf16.msra.mxu0 %v590
      %637 = vmatprep.subr.bf16.mxu0 0
      %638 = vmatpush1.bf16.msra.mxu0 %v589
      %639 = vmatprep.subr.bf16.mxu0 0
      %640 = vmatpush2.bf16.msra.mxu0 0
      %641 = vmatprep.subr.bf16.mxu0 0
      %642 = vmatpush2.bf16.msra.mxu0 0
      %643 = vmatprep.subr.bf16.mxu0 0
      %644 = vmatpush2.bf16.msra.mxu0 0
      %645 = vmatprep.subr.bf16.mxu0 0
      %646 = vmatpush2.bf16.msra.mxu0 0
      %647 = vmatprep.subr.bf16.mxu0 0
      %648 = vmatpush2.bf16.msra.mxu0 0
      %649 = vmatprep.subr.bf16.mxu0 0
      %650 = vmatpush2.bf16.msra.mxu0 0
      %651 = vmatprep.subr.bf16.mxu0 0
      %652 = vmatpush2.bf16.msra.mxu0 0
      %653 = vmatprep.subr.bf16.mxu0 0
      %654 = vmatpush2.bf16.msra.mxu0 0
      %655 = vmatprep.mubr.bf16.mxu0 0
      %656 = vmatmul.mubr.bf16.gmra.mxu0 %v596
      %v657 = vpop.f32.mrf.mxu0
      %v658 = vadd.f32 %v537, %v657
      %v659 = vpop.f32.mrf.mxu0
      %v660 = vpop.f32.mrf.mxu0
      %v661 = vadd.f32 %v537, %v660
      %v662 = vpop.f32.mrf.mxu0
      %663 = vmatprep.mubr.bf16.mxu0 0
      %664 = vmatmul.mubr.bf16.gmra.mxu0 %v599
      %v665 = vpop.f32.mrf.mxu0
      %v666 = vadd.f32 %v537, %v665
      %v667 = vpop.f32.mrf.mxu0
      %v668 = vpop.f32.mrf.mxu0
      %v669 = vadd.f32 %v537, %v668
      %v670 = vpop.f32.mrf.mxu0
      %671 = vmatprep.mubr.bf16.mxu0 0
      %672 = vmatmul.mubr.bf16.gmra.mxu0 %v602
      %v673 = vpop.f32.mrf.mxu0
      %v674 = vadd.f32 %v537, %v673
      %v675 = vpop.f32.mrf.mxu0
      %v676 = vpop.f32.mrf.mxu0
      %v677 = vadd.f32 %v537, %v676
      %v678 = vpop.f32.mrf.mxu0
      %679 = vmatprep.mubr.bf16.mxu0 0
      %680 = vmatmul.mubr.bf16.gmra.mxu0 %v605
      %v681 = vpop.f32.mrf.mxu0
      %v682 = vadd.f32 %v537, %v681
      %v683 = vpop.f32.mrf.mxu0
      %v684 = vpop.f32.mrf.mxu0
      %v685 = vadd.f32 %v537, %v684
      %v686 = vpop.f32.mrf.mxu0
      %687 = vmatprep.mubr.bf16.mxu0 0
      %688 = vmatmul.mubr.bf16.gmra.mxu0 %v608
      %v689 = vpop.f32.mrf.mxu0
      %v690 = vadd.f32 %v537, %v689
      %v691 = vpop.f32.mrf.mxu0
      %v692 = vpop.f32.mrf.mxu0
      %v693 = vadd.f32 %v537, %v692
      %v694 = vpop.f32.mrf.mxu0
      %695 = vmatprep.mubr.bf16.mxu0 0
      %696 = vmatmul.mubr.bf16.gmra.mxu0 %v611
      %v697 = vpop.f32.mrf.mxu0
      %v698 = vadd.f32 %v537, %v697
      %v699 = vpop.f32.mrf.mxu0
      %v700 = vpop.f32.mrf.mxu0
      %v701 = vadd.f32 %v537, %v700
      %v702 = vpop.f32.mrf.mxu0
      %703 = vmatprep.mubr.bf16.mxu0 0
      %704 = vmatmul.mubr.bf16.gmra.mxu0 %v614
      %v705 = vpop.f32.mrf.mxu0
      %v706 = vadd.f32 %v537, %v705
      %v707 = vpop.f32.mrf.mxu0
      %v708 = vpop.f32.mrf.mxu0
      %v709 = vadd.f32 %v537, %v708
      %v710 = vpop.f32.mrf.mxu0
      %711 = vmatprep.mubr.bf16.mxu0 0
      %712 = vmatmul.mubr.bf16.gmra.mxu0 %v617
      %v713 = vpop.f32.mrf.mxu0
      %v714 = vadd.f32 %v537, %v713
      %v715 = vpop.f32.mrf.mxu0
      %v716 = vpop.f32.mrf.mxu0
      %v717 = vadd.f32 %v537, %v716
      %v718 = vpop.f32.mrf.mxu0
      %719 = vdwg.mxu0
      %v720 = vmax.f32 %v658, 0.0
      %v721 = vmax.f32 %v661, 0.0
      %v722 = vmax.f32 %v666, 0.0
      %v723 = vmax.f32 %v669, 0.0
      %v724 = vmax.f32 %v674, 0.0
      %v725 = vmax.f32 %v677, 0.0
      %v726 = vmax.f32 %v682, 0.0
      %v727 = vmax.f32 %v685, 0.0
      %v728 = vmax.f32 %v690, 0.0
      %v729 = vmax.f32 %v693, 0.0
      %v730 = vmax.f32 %v698, 0.0
      %v731 = vmax.f32 %v701, 0.0
      %v732 = vmax.f32 %v706, 0.0
      %v733 = vmax.f32 %v709, 0.0
      %v734 = vmax.f32 %v714, 0.0
      %v735 = vmax.f32 %v717, 0.0
      %v736 = vpack.c.bf16 %v721, %v720
      %v737 = vpack.c.bf16 %v723, %v722
      %v738 = vpack.c.bf16 %v725, %v724
      %v739 = vpack.c.bf16 %v727, %v726
      %v740 = vpack.c.bf16 %v729, %v728
      %v741 = vpack.c.bf16 %v731, %v730
      %v742 = vpack.c.bf16 %v733, %v732
      %v743 = vpack.c.bf16 %v735, %v734
      %v744 = vld [vmem:[%s3] sm:$0xf]
      %v745 = vld [vmem:[%s3 + $0x4] sm:$0xf]
      %v746 = vld [vmem:[%s3 + $0x8] sm:$0xf]
      %v747 = vld [vmem:[%s3 + $0xc] sm:$0xf]
      %v748 = vld [vmem:[%s3 + $0x10] sm:$0xf]
      %v749 = vld [vmem:[%s3 + $0x14] sm:$0xf]
      %v750 = vld [vmem:[%s3 + $0x18] sm:$0xf]
      %v751 = vld [vmem:[%s3 + $0x1c] sm:$0xf]
      %v752 = vld [vmem:[%s3 + $0x20] sm:$0xf]
      %v753 = vld [vmem:[%s3 + $0x24] sm:$0xf]
      %v754 = vld [vmem:[%s3 + $0x28] sm:$0xf]
      %v755 = vld [vmem:[%s3 + $0x2c] sm:$0xf]
      %v756 = vld [vmem:[%s3 + $0x30] sm:$0xf]
      %v757 = vld [vmem:[%s3 + $0x34] sm:$0xf]
      %v758 = vld [vmem:[%s3 + $0x38] sm:$0xf]
      %v759 = vld [vmem:[%s3 + $0x3c] sm:$0xf]
      %v760 = vld [vmem:[%s4] sm:$0x1]
      %v762 = vlaneseq
      %v763 = vshrl.u32 %v762, 7
      %v764 = vsub.s32 0, %v763
      %v765 = vrot.slane %v760, %v764
      %v783 = vunpack.c.l.b16 %v744
      %v784 = vunpack.c.l.b16 %v745
      %v785 = vunpack.c.l.b16 %v746
      %v786 = vunpack.c.l.b16 %v747
      %v787 = vunpack.c.l.b16 %v748
      %v788 = vunpack.c.l.b16 %v749
      %v789 = vunpack.c.l.b16 %v750
      %v790 = vunpack.c.l.b16 %v751
      %v791 = vunpack.c.l.b16 %v752
      %v792 = vunpack.c.l.b16 %v753
      %v793 = vunpack.c.l.b16 %v754
      %v794 = vunpack.c.l.b16 %v755
      %v795 = vunpack.c.l.b16 %v756
      %v796 = vunpack.c.l.b16 %v757
      %v797 = vunpack.c.l.b16 %v758
      %v798 = vunpack.c.l.b16 %v759
      %v799 = vpack.c.b16 %v784, %v783
      %v800 = vpack.c.b16 %v786, %v785
      %v801 = vpack.c.b16 %v788, %v787
      %v802 = vpack.c.b16 %v790, %v789
      %v803 = vpack.c.b16 %v792, %v791
      %v804 = vpack.c.b16 %v794, %v793
      %v805 = vpack.c.b16 %v796, %v795
      %v806 = vpack.c.b16 %v798, %v797
      %815 = vmatprep.subr.bf16.mxu0 0
      %816 = vmatpush1.bf16.msra.mxu0 %v806
      %817 = vmatprep.subr.bf16.mxu0 0
      %818 = vmatpush1.bf16.msra.mxu0 %v805
      %819 = vmatprep.subr.bf16.mxu0 0
      %820 = vmatpush1.bf16.msra.mxu0 %v804
      %821 = vmatprep.subr.bf16.mxu0 0
      %822 = vmatpush1.bf16.msra.mxu0 %v803
      %823 = vmatprep.subr.bf16.mxu0 0
      %824 = vmatpush1.bf16.msra.mxu0 %v802
      %825 = vmatprep.subr.bf16.mxu0 0
      %826 = vmatpush1.bf16.msra.mxu0 %v801
      %827 = vmatprep.subr.bf16.mxu0 0
      %828 = vmatpush1.bf16.msra.mxu0 %v800
      %829 = vmatprep.subr.bf16.mxu0 0
      %830 = vmatpush1.bf16.msra.mxu0 %v799
      %831 = vmatprep.subr.bf16.mxu0 0
      %832 = vmatpush2.bf16.msra.mxu0 0
      %833 = vmatprep.subr.bf16.mxu0 0
      %834 = vmatpush2.bf16.msra.mxu0 0
      %835 = vmatprep.subr.bf16.mxu0 0
      %836 = vmatpush2.bf16.msra.mxu0 0
      %837 = vmatprep.subr.bf16.mxu0 0
      %838 = vmatpush2.bf16.msra.mxu0 0
      %839 = vmatprep.subr.bf16.mxu0 0
      %840 = vmatpush2.bf16.msra.mxu0 0
      %841 = vmatprep.subr.bf16.mxu0 0
      %842 = vmatpush2.bf16.msra.mxu0 0
      %843 = vmatprep.subr.bf16.mxu0 0
      %844 = vmatpush2.bf16.msra.mxu0 0
      %845 = vmatprep.subr.bf16.mxu0 0
      %846 = vmatpush2.bf16.msra.mxu0 0
      %847 = vmatprep.mubr.bf16.mxu0 0
      %848 = vmatmul.mubr.bf16.gmra.mxu0 %v736
      %v849 = vpop.f32.mrf.mxu0
      %v850 = vadd.f32 %v765, %v849
      %v851 = vpop.f32.mrf.mxu0
      %v852 = vpop.f32.mrf.mxu0
      %v853 = vadd.f32 %v765, %v852
      %v854 = vpop.f32.mrf.mxu0
      %855 = vmatprep.mubr.bf16.mxu0 0
      %856 = vmatmul.mubr.bf16.gmra.mxu0 %v737
      %v857 = vpop.f32.mrf.mxu0
      %v858 = vadd.f32 %v765, %v857
      %v859 = vpop.f32.mrf.mxu0
      %v860 = vpop.f32.mrf.mxu0
      %v861 = vadd.f32 %v765, %v860
      %v862 = vpop.f32.mrf.mxu0
      %863 = vmatprep.mubr.bf16.mxu0 0
      %864 = vmatmul.mubr.bf16.gmra.mxu0 %v738
      %v865 = vpop.f32.mrf.mxu0
      %v866 = vadd.f32 %v765, %v865
      %v867 = vpop.f32.mrf.mxu0
      %v868 = vpop.f32.mrf.mxu0
      %v869 = vadd.f32 %v765, %v868
      %v870 = vpop.f32.mrf.mxu0
      %871 = vmatprep.mubr.bf16.mxu0 0
      %872 = vmatmul.mubr.bf16.gmra.mxu0 %v739
      %v873 = vpop.f32.mrf.mxu0
      %v874 = vadd.f32 %v765, %v873
      %v875 = vpop.f32.mrf.mxu0
      %v876 = vpop.f32.mrf.mxu0
      %v877 = vadd.f32 %v765, %v876
      %v878 = vpop.f32.mrf.mxu0
      %879 = vmatprep.mubr.bf16.mxu0 0
      %880 = vmatmul.mubr.bf16.gmra.mxu0 %v740
      %v881 = vpop.f32.mrf.mxu0
      %v882 = vadd.f32 %v765, %v881
      %v883 = vpop.f32.mrf.mxu0
      %v884 = vpop.f32.mrf.mxu0
      %v885 = vadd.f32 %v765, %v884
      %v886 = vpop.f32.mrf.mxu0
      %887 = vmatprep.mubr.bf16.mxu0 0
      %888 = vmatmul.mubr.bf16.gmra.mxu0 %v741
      %v889 = vpop.f32.mrf.mxu0
      %v890 = vadd.f32 %v765, %v889
      %v891 = vpop.f32.mrf.mxu0
      %v892 = vpop.f32.mrf.mxu0
      %v893 = vadd.f32 %v765, %v892
      %v894 = vpop.f32.mrf.mxu0
      %895 = vmatprep.mubr.bf16.mxu0 0
      %896 = vmatmul.mubr.bf16.gmra.mxu0 %v742
      %v897 = vpop.f32.mrf.mxu0
      %v898 = vadd.f32 %v765, %v897
      %v899 = vpop.f32.mrf.mxu0
      %v900 = vpop.f32.mrf.mxu0
      %v901 = vadd.f32 %v765, %v900
      %v902 = vpop.f32.mrf.mxu0
      %903 = vmatprep.mubr.bf16.mxu0 0
      %904 = vmatmul.mubr.bf16.gmra.mxu0 %v743
      %v905 = vpop.f32.mrf.mxu0
      %v906 = vadd.f32 %v765, %v905
      %v907 = vpop.f32.mrf.mxu0
      %v908 = vpop.f32.mrf.mxu0
      %v909 = vadd.f32 %v765, %v908
      %v910 = vpop.f32.mrf.mxu0
      %911 = vdwg.mxu0
      %v912 = vmax.f32 %v850, 0.0
      %v913 = vmax.f32 %v853, 0.0
      %v914 = vmax.f32 %v858, 0.0
      %v915 = vmax.f32 %v861, 0.0
      %v916 = vmax.f32 %v866, 0.0
      %v917 = vmax.f32 %v869, 0.0
      %v918 = vmax.f32 %v874, 0.0
      %v919 = vmax.f32 %v877, 0.0
      %v920 = vmax.f32 %v882, 0.0
      %v921 = vmax.f32 %v885, 0.0
      %v922 = vmax.f32 %v890, 0.0
      %v923 = vmax.f32 %v893, 0.0
      %v924 = vmax.f32 %v898, 0.0
      %v925 = vmax.f32 %v901, 0.0
      %v926 = vmax.f32 %v906, 0.0
      %v927 = vmax.f32 %v909, 0.0
      %v928 = vpack.c.bf16 %v913, %v912
      %v929 = vpack.c.bf16 %v915, %v914
      %v930 = vpack.c.bf16 %v917, %v916
      %v931 = vpack.c.bf16 %v919, %v918
      %v932 = vpack.c.bf16 %v921, %v920
      %v933 = vpack.c.bf16 %v923, %v922
      %v934 = vpack.c.bf16 %v925, %v924
      %v935 = vpack.c.bf16 %v927, %v926
      %v936 = vld [vmem:[%s5] sm:$0xf]
      %v937 = vld [vmem:[%s5 + $0x4] sm:$0xf]
      %v938 = vld [vmem:[%s5 + $0x8] sm:$0xf]
      %v939 = vld [vmem:[%s5 + $0xc] sm:$0xf]
      %v940 = vld [vmem:[%s5 + $0x10] sm:$0xf]
      %v941 = vld [vmem:[%s5 + $0x14] sm:$0xf]
      %v942 = vld [vmem:[%s5 + $0x18] sm:$0xf]
      %v943 = vld [vmem:[%s5 + $0x1c] sm:$0xf]
      %v944 = vld [vmem:[%s5 + $0x20] sm:$0xf]
      %v945 = vld [vmem:[%s5 + $0x24] sm:$0xf]
      %v946 = vld [vmem:[%s5 + $0x28] sm:$0xf]
      %v947 = vld [vmem:[%s5 + $0x2c] sm:$0xf]
      %v948 = vld [vmem:[%s5 + $0x30] sm:$0xf]
      %v949 = vld [vmem:[%s5 + $0x34] sm:$0xf]
      %v950 = vld [vmem:[%s5 + $0x38] sm:$0xf]
      %v951 = vld [vmem:[%s5 + $0x3c] sm:$0xf]
      %v968 = vunpack.c.l.b16 %v936
      %v969 = vunpack.c.l.b16 %v937
      %v970 = vunpack.c.l.b16 %v938
      %v971 = vunpack.c.l.b16 %v939
      %v972 = vunpack.c.l.b16 %v940
      %v973 = vunpack.c.l.b16 %v941
      %v974 = vunpack.c.l.b16 %v942
      %v975 = vunpack.c.l.b16 %v943
      %v976 = vunpack.c.l.b16 %v944
      %v977 = vunpack.c.l.b16 %v945
      %v978 = vunpack.c.l.b16 %v946
      %v979 = vunpack.c.l.b16 %v947
      %v980 = vunpack.c.l.b16 %v948
      %v981 = vunpack.c.l.b16 %v949
      %v982 = vunpack.c.l.b16 %v950
      %v983 = vunpack.c.l.b16 %v951
      %v984 = vpack.c.b16 %v969, %v968
      %v985 = vpack.c.b16 %v971, %v970
      %v986 = vpack.c.b16 %v973, %v972
      %v987 = vpack.c.b16 %v975, %v974
      %v988 = vpack.c.b16 %v977, %v976
      %v989 = vpack.c.b16 %v979, %v978
      %v990 = vpack.c.b16 %v981, %v980
      %v991 = vpack.c.b16 %v983, %v982
      %1000 = vmatprep.subr.bf16.mxu0 0
      %1001 = vmatpush1.bf16.msra.mxu0 %v991
      %1002 = vmatprep.subr.bf16.mxu0 0
      %1003 = vmatpush1.bf16.msra.mxu0 %v990
      %1004 = vmatprep.subr.bf16.mxu0 0
      %1005 = vmatpush1.bf16.msra.mxu0 %v989
      %1006 = vmatprep.subr.bf16.mxu0 0
      %1007 = vmatpush1.bf16.msra.mxu0 %v988
      %1008 = vmatprep.subr.bf16.mxu0 0
      %1009 = vmatpush1.bf16.msra.mxu0 %v987
      %1010 = vmatprep.subr.bf16.mxu0 0
      %1011 = vmatpush1.bf16.msra.mxu0 %v986
      %1012 = vmatprep.subr.bf16.mxu0 0
      %1013 = vmatpush1.bf16.msra.mxu0 %v985
      %1014 = vmatprep.subr.bf16.mxu0 0
      %1015 = vmatpush1.bf16.msra.mxu0 %v984
      %1016 = vmatprep.subr.bf16.mxu0 0
      %1017 = vmatpush2.bf16.msra.mxu0 0
      %1018 = vmatprep.subr.bf16.mxu0 0
      %1019 = vmatpush2.bf16.msra.mxu0 0
      %1020 = vmatprep.subr.bf16.mxu0 0
      %1021 = vmatpush2.bf16.msra.mxu0 0
      %1022 = vmatprep.subr.bf16.mxu0 0
      %1023 = vmatpush2.bf16.msra.mxu0 0
      %1024 = vmatprep.subr.bf16.mxu0 0
      %1025 = vmatpush2.bf16.msra.mxu0 0
      %1026 = vmatprep.subr.bf16.mxu0 0
      %1027 = vmatpush2.bf16.msra.mxu0 0
      %1028 = vmatprep.subr.bf16.mxu0 0
      %1029 = vmatpush2.bf16.msra.mxu0 0
      %1030 = vmatprep.subr.bf16.mxu0 0
      %1031 = vmatpush2.bf16.msra.mxu0 0
      %1032 = vmatprep.mubr.bf16.mxu0 0
      %1033 = vmatmul.mubr.bf16.gmra.mxu0 %v928
      %v1034 = vpop.f32.mrf.mxu0
      %v1035 = vadd.f32 0.0, %v1034
      %v1036 = vpop.f32.mrf.mxu0
      %v1037 = vpop.f32.mrf.mxu0
      %v1038 = vadd.f32 0.0, %v1037
      %v1039 = vpop.f32.mrf.mxu0
      %1040 = vmatprep.mubr.bf16.mxu0 0
      %1041 = vmatmul.mubr.bf16.gmra.mxu0 %v929
      %v1042 = vpop.f32.mrf.mxu0
      %v1043 = vadd.f32 0.0, %v1042
      %v1044 = vpop.f32.mrf.mxu0
      %v1045 = vpop.f32.mrf.mxu0
      %v1046 = vadd.f32 0.0, %v1045
      %v1047 = vpop.f32.mrf.mxu0
      %1048 = vmatprep.mubr.bf16.mxu0 0
      %1049 = vmatmul.mubr.bf16.gmra.mxu0 %v930
      %v1050 = vpop.f32.mrf.mxu0
      %v1051 = vadd.f32 0.0, %v1050
      %v1052 = vpop.f32.mrf.mxu0
      %v1053 = vpop.f32.mrf.mxu0
      %v1054 = vadd.f32 0.0, %v1053
      %v1055 = vpop.f32.mrf.mxu0
      %1056 = vmatprep.mubr.bf16.mxu0 0
      %1057 = vmatmul.mubr.bf16.gmra.mxu0 %v931
      %v1058 = vpop.f32.mrf.mxu0
      %v1059 = vadd.f32 0.0, %v1058
      %v1060 = vpop.f32.mrf.mxu0
      %v1061 = vpop.f32.mrf.mxu0
      %v1062 = vadd.f32 0.0, %v1061
      %v1063 = vpop.f32.mrf.mxu0
      %1064 = vmatprep.mubr.bf16.mxu0 0
      %1065 = vmatmul.mubr.bf16.gmra.mxu0 %v932
      %v1066 = vpop.f32.mrf.mxu0
      %v1067 = vadd.f32 0.0, %v1066
      %v1068 = vpop.f32.mrf.mxu0
      %v1069 = vpop.f32.mrf.mxu0
      %v1070 = vadd.f32 0.0, %v1069
      %v1071 = vpop.f32.mrf.mxu0
      %1072 = vmatprep.mubr.bf16.mxu0 0
      %1073 = vmatmul.mubr.bf16.gmra.mxu0 %v933
      %v1074 = vpop.f32.mrf.mxu0
      %v1075 = vadd.f32 0.0, %v1074
      %v1076 = vpop.f32.mrf.mxu0
      %v1077 = vpop.f32.mrf.mxu0
      %v1078 = vadd.f32 0.0, %v1077
      %v1079 = vpop.f32.mrf.mxu0
      %1080 = vmatprep.mubr.bf16.mxu0 0
      %1081 = vmatmul.mubr.bf16.gmra.mxu0 %v934
      %v1082 = vpop.f32.mrf.mxu0
      %v1083 = vadd.f32 0.0, %v1082
      %v1084 = vpop.f32.mrf.mxu0
      %v1085 = vpop.f32.mrf.mxu0
      %v1086 = vadd.f32 0.0, %v1085
      %v1087 = vpop.f32.mrf.mxu0
      %1088 = vmatprep.mubr.bf16.mxu0 0
      %1089 = vmatmul.mubr.bf16.gmra.mxu0 %v935
      %v1090 = vpop.f32.mrf.mxu0
      %v1091 = vadd.f32 0.0, %v1090
      %v1092 = vpop.f32.mrf.mxu0
      %v1093 = vpop.f32.mrf.mxu0
      %v1094 = vadd.f32 0.0, %v1093
      %v1095 = vpop.f32.mrf.mxu0
      %1096 = vdwg.mxu0
      %v1097 = vmax.f32 %v1035, %v1038
      %v1098 = vrot.slane %v1097, 4
      %v1099 = vmax.f32 %v1097, %v1098
      %v1100 = vrot.slane %v1099, 2
      %v1101 = vmax.f32 %v1099, %v1100
      %v1102 = vrot.slane %v1101, 1
      %v1103 = vmax.f32 %v1101, %v1102
      %v1104 = vmax.f32 %v1043, %v1046
      %v1105 = vrot.slane %v1104, 4
      %v1106 = vmax.f32 %v1104, %v1105
      %v1107 = vrot.slane %v1106, 2
      %v1108 = vmax.f32 %v1106, %v1107
      %v1109 = vrot.slane %v1108, 1
      %v1110 = vmax.f32 %v1108, %v1109
      %v1111 = vmax.f32 %v1051, %v1054
      %v1112 = vrot.slane %v1111, 4
      %v1113 = vmax.f32 %v1111, %v1112
      %v1114 = vrot.slane %v1113, 2
      %v1115 = vmax.f32 %v1113, %v1114
      %v1116 = vrot.slane %v1115, 1
      %v1117 = vmax.f32 %v1115, %v1116
      %v1118 = vmax.f32 %v1059, %v1062
      %v1119 = vrot.slane %v1118, 4
      %v1120 = vmax.f32 %v1118, %v1119
      %v1121 = vrot.slane %v1120, 2
      %v1122 = vmax.f32 %v1120, %v1121
      %v1123 = vrot.slane %v1122, 1
      %v1124 = vmax.f32 %v1122, %v1123
      %v1125 = vmax.f32 %v1067, %v1070
      %v1126 = vrot.slane %v1125, 4
      %v1127 = vmax.f32 %v1125, %v1126
      %v1128 = vrot.slane %v1127, 2
      %v1129 = vmax.f32 %v1127, %v1128
      %v1130 = vrot.slane %v1129, 1
      %v1131 = vmax.f32 %v1129, %v1130
      %v1132 = vmax.f32 %v1075, %v1078
      %v1133 = vrot.slane %v1132, 4
      %v1134 = vmax.f32 %v1132, %v1133
      %v1135 = vrot.slane %v1134, 2
      %v1136 = vmax.f32 %v1134, %v1135
      %v1137 = vrot.slane %v1136, 1
      %v1138 = vmax.f32 %v1136, %v1137
      %v1139 = vmax.f32 %v1083, %v1086
      %v1140 = vrot.slane %v1139, 4
      %v1141 = vmax.f32 %v1139, %v1140
      %v1142 = vrot.slane %v1141, 2
      %v1143 = vmax.f32 %v1141, %v1142
      %v1144 = vrot.slane %v1143, 1
      %v1145 = vmax.f32 %v1143, %v1144
      %v1146 = vmax.f32 %v1091, %v1094
      %v1147 = vrot.slane %v1146, 4
      %v1148 = vmax.f32 %v1146, %v1147
      %v1149 = vrot.slane %v1148, 2
      %v1150 = vmax.f32 %v1148, %v1149
      %v1151 = vrot.slane %v1150, 1
      %v1152 = vmax.f32 %v1150, %v1151
      %p1153 = scmp.eq.s32.totalorder %s31, 0
      // Predicated region
      $region73: #{proposal_module_forward.1} parent=71 // pred_check
        %p1154 = pneg %p1153
      $region74: #{proposal_module_forward.1} parent=71 // pred_check_branch
        %1156 = sbr.rel (%p1154) target = $region76
      $region75: #{proposal_module_forward.1} parent=71 // pred_region
        %1157 = vst [vmem:[#allocation2] sm:$0xff] -inf
      $region76: #{proposal_module_forward.1} parent=71 // pred_fallthru
        _
      %v1158 = vld [vmem:[#allocation2] sm:$0xff]
      %vm1167 = vcmask 1041409
      %v1168 = vsel %vm1167, %v1110, %v1103
      %vm1169 = vcmask 1042434
      %v1170 = vsel %vm1169, %v1117, %v1168
      %vm1171 = vcmask 1043459
      %v1172 = vsel %vm1171, %v1124, %v1170
      %vm1173 = vcmask 1044484
      %v1174 = vsel %vm1173, %v1131, %v1172
      %vm1175 = vcmask 1045509
      %v1176 = vsel %vm1175, %v1138, %v1174
      %vm1177 = vcmask 1046534
      %v1178 = vsel %vm1177, %v1145, %v1176
      %vm1179 = vcmask 1047559
      %v1180 = vsel %vm1179, %v1152, %v1178
      %v1182 = vmax.f32 %v1158, %v1180
      %1183 = vst [vmem:[#allocation2] sm:$0xff] %v1182
      // Predicated region
      $region77: #{proposal_module_forward.1} parent=71 // pred_check
        %p1184 = pneg %p1153
      $region78: #{proposal_module_forward.1} parent=71 // pred_check_branch
        %1186 = sbr.rel (%p1184) target = $region80
      $region79: #{proposal_module_forward.1} parent=71 // pred_region
        %v1187 = vld [vmem:[#allocation2] sm:$0xff]
        %v1188 = vld [vmem:[%s6] sm:$0x1]
        %v1190 = vlaneseq
        %v1191 = vshrl.u32 %v1190, 7
        %v1192 = vsub.s32 0, %v1191
        %v1193 = vrot.slane %v1188, %v1192
        %v1195 = vadd.f32 %v1187, %v1193
        %v1196 = vmax.f32 %v1195, 0.0
        %v1197 = vpack.c.bf16 %v1196, %v1196
        %1198 = vst [vmem:[%s505] sm:$0xf] %v1197
        %v1199 = vld [vmem:[%s7] sm:$0xf]
        %v1200 = vld [vmem:[%s7 + $0x4] sm:$0xf]
        %v1201 = vld [vmem:[%s7 + $0x8] sm:$0xf]
        %v1202 = vld [vmem:[%s7 + $0xc] sm:$0xf]
        %v1203 = vld [vmem:[%s7 + $0x10] sm:$0xf]
        %v1204 = vld [vmem:[%s7 + $0x14] sm:$0xf]
        %v1205 = vld [vmem:[%s7 + $0x18] sm:$0xf]
        %v1206 = vld [vmem:[%s7 + $0x1c] sm:$0xf]
        %v1207 = vld [vmem:[%s7 + $0x20] sm:$0xf]
        %v1208 = vld [vmem:[%s7 + $0x24] sm:$0xf]
        %v1209 = vld [vmem:[%s7 + $0x28] sm:$0xf]
        %v1210 = vld [vmem:[%s7 + $0x2c] sm:$0xf]
        %v1211 = vld [vmem:[%s7 + $0x30] sm:$0xf]
        %v1212 = vld [vmem:[%s7 + $0x34] sm:$0xf]
        %v1213 = vld [vmem:[%s7 + $0x38] sm:$0xf]
        %v1214 = vld [vmem:[%s7 + $0x3c] sm:$0xf]
        %v1215 = vld [vmem:[%s8] sm:$0x1]
        %v1217 = vlaneseq
        %v1218 = vshrl.u32 %v1217, 7
        %v1219 = vsub.s32 0, %v1218
        %v1220 = vrot.slane %v1215, %v1219
        %v1238 = vunpack.c.l.b16 %v1199
        %v1239 = vunpack.c.l.b16 %v1200
        %v1240 = vunpack.c.l.b16 %v1201
        %v1241 = vunpack.c.l.b16 %v1202
        %v1242 = vunpack.c.l.b16 %v1203
        %v1243 = vunpack.c.l.b16 %v1204
        %v1244 = vunpack.c.l.b16 %v1205
        %v1245 = vunpack.c.l.b16 %v1206
        %v1246 = vunpack.c.l.b16 %v1207
        %v1247 = vunpack.c.l.b16 %v1208
        %v1248 = vunpack.c.l.b16 %v1209
        %v1249 = vunpack.c.l.b16 %v1210
        %v1250 = vunpack.c.l.b16 %v1211
        %v1251 = vunpack.c.l.b16 %v1212
        %v1252 = vunpack.c.l.b16 %v1213
        %v1253 = vunpack.c.l.b16 %v1214
        %v1254 = vpack.c.b16 %v1239, %v1238
        %v1255 = vpack.c.b16 %v1241, %v1240
        %v1256 = vpack.c.b16 %v1243, %v1242
        %v1257 = vpack.c.b16 %v1245, %v1244
        %v1258 = vpack.c.b16 %v1247, %v1246
        %v1259 = vpack.c.b16 %v1249, %v1248
        %v1260 = vpack.c.b16 %v1251, %v1250
        %v1261 = vpack.c.b16 %v1253, %v1252
        %1270 = vmatprep.subr.bf16.mxu0 0
        %1271 = vmatpush1.bf16.msra.mxu0 %v1261
        %1272 = vmatprep.subr.bf16.mxu0 0
        %1273 = vmatpush1.bf16.msra.mxu0 %v1260
        %1274 = vmatprep.subr.bf16.mxu0 0
        %1275 = vmatpush1.bf16.msra.mxu0 %v1259
        %1276 = vmatprep.subr.bf16.mxu0 0
        %1277 = vmatpush1.bf16.msra.mxu0 %v1258
        %1278 = vmatprep.subr.bf16.mxu0 0
        %1279 = vmatpush1.bf16.msra.mxu0 %v1257
        %1280 = vmatprep.subr.bf16.mxu0 0
        %1281 = vmatpush1.bf16.msra.mxu0 %v1256
        %1282 = vmatprep.subr.bf16.mxu0 0
        %1283 = vmatpush1.bf16.msra.mxu0 %v1255
        %1284 = vmatprep.subr.bf16.mxu0 0
        %1285 = vmatpush1.bf16.msra.mxu0 %v1254
        %1286 = vmatprep.subr.bf16.mxu0 0
        %1287 = vmatpush2.bf16.msra.mxu0 0
        %1288 = vmatprep.subr.bf16.mxu0 0
        %1289 = vmatpush2.bf16.msra.mxu0 0
        %1290 = vmatprep.subr.bf16.mxu0 0
        %1291 = vmatpush2.bf16.msra.mxu0 0
        %1292 = vmatprep.subr.bf16.mxu0 0
        %1293 = vmatpush2.bf16.msra.mxu0 0
        %1294 = vmatprep.subr.bf16.mxu0 0
        %1295 = vmatpush2.bf16.msra.mxu0 0
        %1296 = vmatprep.subr.bf16.mxu0 0
        %1297 = vmatpush2.bf16.msra.mxu0 0
        %1298 = vmatprep.subr.bf16.mxu0 0
        %1299 = vmatpush2.bf16.msra.mxu0 0
        %1300 = vmatprep.subr.bf16.mxu0 0
        %1301 = vmatpush2.bf16.msra.mxu0 0
        %1302 = vmatprep.mubr.bf16.mxu0 0
        %1303 = vmatmul.mubr.bf16.gmra.mxu0 %v1197
        %v1304 = vpop.f32.mrf.mxu0
        %v1305 = vadd.f32 %v1220, %v1304
        %v1306 = vpop.f32.mrf.mxu0
        %v1307 = vpop.f32.mrf.mxu0
        %v1308 = vpop.f32.mrf.mxu0
        %1309 = vdwg.mxu0
        %v1310 = vmax.f32 %v1305, 0.0
        %v1311 = vpack.c.bf16 %v1310, %v1310
        %v1312 = vld [vmem:[%s9] sm:$0xf]
        %v1313 = vld [vmem:[%s9 + $0x4] sm:$0xf]
        %v1314 = vld [vmem:[%s9 + $0x8] sm:$0xf]
        %v1315 = vld [vmem:[%s9 + $0xc] sm:$0xf]
        %v1316 = vld [vmem:[%s9 + $0x10] sm:$0xf]
        %v1317 = vld [vmem:[%s9 + $0x14] sm:$0xf]
        %v1318 = vld [vmem:[%s9 + $0x18] sm:$0xf]
        %v1319 = vld [vmem:[%s9 + $0x1c] sm:$0xf]
        %v1320 = vld [vmem:[%s9 + $0x20] sm:$0xf]
        %v1321 = vld [vmem:[%s9 + $0x24] sm:$0xf]
        %v1322 = vld [vmem:[%s9 + $0x28] sm:$0xf]
        %v1323 = vld [vmem:[%s9 + $0x2c] sm:$0xf]
        %v1324 = vld [vmem:[%s9 + $0x30] sm:$0xf]
        %v1325 = vld [vmem:[%s9 + $0x34] sm:$0xf]
        %v1326 = vld [vmem:[%s9 + $0x38] sm:$0xf]
        %v1327 = vld [vmem:[%s9 + $0x3c] sm:$0xf]
        %v1328 = vld [vmem:[%s10] sm:$0x1]
        %v1330 = vlaneseq
        %v1331 = vshrl.u32 %v1330, 7
        %v1332 = vsub.s32 0, %v1331
        %v1333 = vrot.slane %v1328, %v1332
        %v1351 = vunpack.c.l.b16 %v1312
        %v1352 = vunpack.c.l.b16 %v1313
        %v1353 = vunpack.c.l.b16 %v1314
        %v1354 = vunpack.c.l.b16 %v1315
        %v1355 = vunpack.c.l.b16 %v1316
        %v1356 = vunpack.c.l.b16 %v1317
        %v1357 = vunpack.c.l.b16 %v1318
        %v1358 = vunpack.c.l.b16 %v1319
        %v1359 = vunpack.c.l.b16 %v1320
        %v1360 = vunpack.c.l.b16 %v1321
        %v1361 = vunpack.c.l.b16 %v1322
        %v1362 = vunpack.c.l.b16 %v1323
        %v1363 = vunpack.c.l.b16 %v1324
        %v1364 = vunpack.c.l.b16 %v1325
        %v1365 = vunpack.c.l.b16 %v1326
        %v1366 = vunpack.c.l.b16 %v1327
        %v1367 = vpack.c.b16 %v1352, %v1351
        %v1368 = vpack.c.b16 %v1354, %v1353
        %v1369 = vpack.c.b16 %v1356, %v1355
        %v1370 = vpack.c.b16 %v1358, %v1357
        %v1371 = vpack.c.b16 %v1360, %v1359
        %v1372 = vpack.c.b16 %v1362, %v1361
        %v1373 = vpack.c.b16 %v1364, %v1363
        %v1374 = vpack.c.b16 %v1366, %v1365
        %1383 = vmatprep.subr.bf16.mxu0 0
        %1384 = vmatpush1.bf16.msra.mxu0 %v1374
        %1385 = vmatprep.subr.bf16.mxu0 0
        %1386 = vmatpush1.bf16.msra.mxu0 %v1373
        %1387 = vmatprep.subr.bf16.mxu0 0
        %1388 = vmatpush1.bf16.msra.mxu0 %v1372
        %1389 = vmatprep.subr.bf16.mxu0 0
        %1390 = vmatpush1.bf16.msra.mxu0 %v1371
        %1391 = vmatprep.subr.bf16.mxu0 0
        %1392 = vmatpush1.bf16.msra.mxu0 %v1370
        %1393 = vmatprep.subr.bf16.mxu0 0
        %1394 = vmatpush1.bf16.msra.mxu0 %v1369
        %1395 = vmatprep.subr.bf16.mxu0 0
        %1396 = vmatpush1.bf16.msra.mxu0 %v1368
        %1397 = vmatprep.subr.bf16.mxu0 0
        %1398 = vmatpush1.bf16.msra.mxu0 %v1367
        %1399 = vmatprep.subr.bf16.mxu0 0
        %1400 = vmatpush2.bf16.msra.mxu0 0
        %1401 = vmatprep.subr.bf16.mxu0 0
        %1402 = vmatpush2.bf16.msra.mxu0 0
        %1403 = vmatprep.subr.bf16.mxu0 0
        %1404 = vmatpush2.bf16.msra.mxu0 0
        %1405 = vmatprep.subr.bf16.mxu0 0
        %1406 = vmatpush2.bf16.msra.mxu0 0
        %1407 = vmatprep.subr.bf16.mxu0 0
        %1408 = vmatpush2.bf16.msra.mxu0 0
        %1409 = vmatprep.subr.bf16.mxu0 0
        %1410 = vmatpush2.bf16.msra.mxu0 0
        %1411 = vmatprep.subr.bf16.mxu0 0
        %1412 = vmatpush2.bf16.msra.mxu0 0
        %1413 = vmatprep.subr.bf16.mxu0 0
        %1414 = vmatpush2.bf16.msra.mxu0 0
        %1415 = vmatprep.mubr.bf16.mxu0 0
        %1416 = vmatmul.mubr.bf16.gmra.mxu0 %v1311
        %v1417 = vpop.f32.mrf.mxu0
        %v1418 = vadd.f32 %v1333, %v1417
        %v1419 = vpop.f32.mrf.mxu0
        %v1420 = vpop.f32.mrf.mxu0
        %v1421 = vpop.f32.mrf.mxu0
        %1422 = vdwg.mxu0
        %v1423 = vmax.f32 %v1418, 0.0
        %v1424 = vpack.c.bf16 %v1423, %v1423
        %v1425 = vld [vmem:[%s11] sm:$0xf]
        %v1426 = vld [vmem:[%s11 + $0x4] sm:$0xf]
        %v1427 = vld [vmem:[%s11 + $0x8] sm:$0xf]
        %v1428 = vld [vmem:[%s11 + $0xc] sm:$0xf]
        %v1429 = vld [vmem:[%s11 + $0x10] sm:$0xf]
        %v1430 = vld [vmem:[%s11 + $0x14] sm:$0xf]
        %v1431 = vld [vmem:[%s11 + $0x18] sm:$0xf]
        %v1432 = vld [vmem:[%s11 + $0x1c] sm:$0xf]
        %v1433 = vld [vmem:[%s11 + $0x20] sm:$0xf]
        %v1434 = vld [vmem:[%s11 + $0x24] sm:$0xf]
        %v1435 = vld [vmem:[%s11 + $0x28] sm:$0xf]
        %v1436 = vld [vmem:[%s11 + $0x2c] sm:$0xf]
        %v1437 = vld [vmem:[%s11 + $0x30] sm:$0xf]
        %v1438 = vld [vmem:[%s11 + $0x34] sm:$0xf]
        %v1439 = vld [vmem:[%s11 + $0x38] sm:$0xf]
        %v1440 = vld [vmem:[%s11 + $0x3c] sm:$0xf]
        %v1441 = vld [vmem:[%s12] sm:$0x1]
        %v1443 = vlaneseq
        %v1444 = vshrl.u32 %v1443, 7
        %v1445 = vsub.s32 0, %v1444
        %v1446 = vrot.slane %v1441, %v1445
        %v1464 = vunpack.c.l.b16 %v1425
        %v1465 = vunpack.c.l.b16 %v1426
        %v1466 = vunpack.c.l.b16 %v1427
        %v1467 = vunpack.c.l.b16 %v1428
        %v1468 = vunpack.c.l.b16 %v1429
        %v1469 = vunpack.c.l.b16 %v1430
        %v1470 = vunpack.c.l.b16 %v1431
        %v1471 = vunpack.c.l.b16 %v1432
        %v1472 = vunpack.c.l.b16 %v1433
        %v1473 = vunpack.c.l.b16 %v1434
        %v1474 = vunpack.c.l.b16 %v1435
        %v1475 = vunpack.c.l.b16 %v1436
        %v1476 = vunpack.c.l.b16 %v1437
        %v1477 = vunpack.c.l.b16 %v1438
        %v1478 = vunpack.c.l.b16 %v1439
        %v1479 = vunpack.c.l.b16 %v1440
        %v1480 = vpack.c.b16 %v1465, %v1464
        %v1481 = vpack.c.b16 %v1467, %v1466
        %v1482 = vpack.c.b16 %v1469, %v1468
        %v1483 = vpack.c.b16 %v1471, %v1470
        %v1484 = vpack.c.b16 %v1473, %v1472
        %v1485 = vpack.c.b16 %v1475, %v1474
        %v1486 = vpack.c.b16 %v1477, %v1476
        %v1487 = vpack.c.b16 %v1479, %v1478
        %1496 = vmatprep.subr.bf16.mxu0 0
        %1497 = vmatpush1.bf16.msra.mxu0 %v1487
        %1498 = vmatprep.subr.bf16.mxu0 0
        %1499 = vmatpush1.bf16.msra.mxu0 %v1486
        %1500 = vmatprep.subr.bf16.mxu0 0
        %1501 = vmatpush1.bf16.msra.mxu0 %v1485
        %1502 = vmatprep.subr.bf16.mxu0 0
        %1503 = vmatpush1.bf16.msra.mxu0 %v1484
        %1504 = vmatprep.subr.bf16.mxu0 0
        %1505 = vmatpush1.bf16.msra.mxu0 %v1483
        %1506 = vmatprep.subr.bf16.mxu0 0
        %1507 = vmatpush1.bf16.msra.mxu0 %v1482
        %1508 = vmatprep.subr.bf16.mxu0 0
        %1509 = vmatpush1.bf16.msra.mxu0 %v1481
        %1510 = vmatprep.subr.bf16.mxu0 0
        %1511 = vmatpush1.bf16.msra.mxu0 %v1480
        %1512 = vmatprep.subr.bf16.mxu0 0
        %1513 = vmatpush2.bf16.msra.mxu0 0
        %1514 = vmatprep.subr.bf16.mxu0 0
        %1515 = vmatpush2.bf16.msra.mxu0 0
        %1516 = vmatprep.subr.bf16.mxu0 0
        %1517 = vmatpush2.bf16.msra.mxu0 0
        %1518 = vmatprep.subr.bf16.mxu0 0
        %1519 = vmatpush2.bf16.msra.mxu0 0
        %1520 = vmatprep.subr.bf16.mxu0 0
        %1521 = vmatpush2.bf16.msra.mxu0 0
        %1522 = vmatprep.subr.bf16.mxu0 0
        %1523 = vmatpush2.bf16.msra.mxu0 0
        %1524 = vmatprep.subr.bf16.mxu0 0
        %1525 = vmatpush2.bf16.msra.mxu0 0
        %1526 = vmatprep.subr.bf16.mxu0 0
        %1527 = vmatpush2.bf16.msra.mxu0 0
        %1528 = vmatprep.mubr.bf16.mxu0 0
        %1529 = vmatmul.mubr.bf16.gmra.mxu0 %v1424
        %v1530 = vpop.f32.mrf.mxu0
        %v1531 = vadd.f32 %v1446, %v1530
        %v1532 = vpop.f32.mrf.mxu0
        %v1533 = vpop.f32.mrf.mxu0
        %v1534 = vpop.f32.mrf.mxu0
        %1535 = vdwg.mxu0
        %1536 = vst [vmem:[%s509] sm:$0xff] %v1531
      $region80: #{proposal_module_forward.1} parent=71 // pred_fallthru
        _
      %p1537 = scmp.lt.s32.totalorder %s30, 1
      %s1538 = scalar_select %p1537, %s30, 1
      %s1539 = smul.addr %s1538, 4
      %s1540 = scalar_lea.vmem %s13, %s1539
      %p1541 = scmp.lt.s32.totalorder %s30, 1
      %s1542 = scalar_select %p1541, %s30, 1
      %s1543 = smul.addr %s1542, 8
      %s1544 = scalar_lea.vmem %s14, %s1543
      // Predicated region
      $region81: #{proposal_module_forward.1} parent=71 // pred_check
        %p1545 = pneg %p336
      $region82: #{proposal_module_forward.1} parent=71 // pred_check_branch
        %1547 = sbr.rel (%p1545) target = $region84
      $region83: #{proposal_module_forward.1} parent=71 // pred_region
        _
      $region84: #{proposal_module_forward.1} parent=71 // pred_fallthru
        _
      // Predicated region
      $region85: #{proposal_module_forward.1} parent=71 // pred_check
        %p1548 = pneg %p362
      $region86: #{proposal_module_forward.1} parent=71 // pred_check_branch
        %1550 = sbr.rel (%p1548) target = $region88
      $region87: #{proposal_module_forward.1} parent=71 // pred_region
        _
      $region88: #{proposal_module_forward.1} parent=71 // pred_fallthru
        _
    $region72: #{proposal_module_forward.1} parent=5 // pred_fallthru
      _
    %p1551 = scmp.le.s32.totalorder 2, %s21
    // Predicated region
    $region89: #{proposal_module_forward.1} parent=5 // pred_check
      %p1552 = pneg %p1551
    $region90: #{proposal_module_forward.1} parent=5 // pred_check_branch
      %1554 = sbr.rel (%p1552) target = $region92
    $region91: #{proposal_module_forward.1} parent=5 // pred_region
      %s1555 = ssub.s32 %s21, 2
      // Predicated region
      $region93: #{proposal_module_forward.1} parent=91 // pred_check
        %p1556 = pneg %p342
      $region94: #{proposal_module_forward.1} parent=91 // pred_check_branch
        %1558 = sbr.rel (%p1556) target = $region96
      $region95: #{proposal_module_forward.1} parent=91 // pred_region
        %p1559 = scmp.lt.s32.totalorder %s32, 1
        %s1560 = scalar_select %p1559, %s32, 1
        %s1561 = smul.addr %s1560, 4
        %s1562 = scalar_lea.vmem %s13, %s1561
      $region96: #{proposal_module_forward.1} parent=91 // pred_fallthru
        _
      // Predicated region
      $region97: #{proposal_module_forward.1} parent=91 // pred_check
        %p1563 = pneg %p368
      $region98: #{proposal_module_forward.1} parent=91 // pred_check_branch
        %1565 = sbr.rel (%p1563) target = $region100
      $region99: #{proposal_module_forward.1} parent=91 // pred_region
        %p1566 = scmp.lt.s32.totalorder %s32, 1
        %s1567 = scalar_select %p1566, %s32, 1
        %s1568 = smul.addr %s1567, 8
        %s1569 = scalar_lea.vmem %s14, %s1568
      $region100: #{proposal_module_forward.1} parent=91 // pred_fallthru
        _
    $region92: #{proposal_module_forward.1} parent=5 // pred_fallthru
      _
  $region6: #{proposal_module_forward.1} parent=0 // loop_footer
    %s25 = sadd.s32 1, %s21
  $region7: #{proposal_module_forward.1} parent=0 // loop_footer_branch
    %20 = sbr.rel target = $region3
  $region8: #{proposal_module_forward.1} parent=0 // loop_exit
    _

</llo_original>
